<compile_context>
chip_gen: v5e
topology: v5e:2x2
jax: 0.10.0
libtpu: 0.0.40
codegen_flags: <defaults>
</compile_context>

<pallas_src>
import math
from functools import partial

import jax
import jax.numpy as jnp
from jax import lax
from jax.experimental import pallas as pl
from jax.experimental.pallas import tpu as pltpu

BN_EPS = 1e-5
_INV_SQRT2 = 0.7071067811865476
_GELU_C = 0.7978845608028654  # sqrt(2/pi)


def _gelu_tanh(y):
    # tanh-approx GELU -> transcendental goes to the EUP slot (nearly free)
    return 0.5 * y * (1.0 + jnp.tanh(_GELU_C * (y + 0.044715 * (y * y * y))))


# ---------------------------------------------------------------------------
# Pallas kernel: fused 3x3 / stride-2 / pad-1 conv + folded BN (+ GELU)
# ---------------------------------------------------------------------------
def _conv3x3_s2_bn_kernel(xe_ref, xo_ref, w_ref, s_ref, b_ref, o_ref, acc_ref,
                          *, tho, wo, cin, cout, apply_gelu):
    """One (batch, row-tile) grid step.

    xe_ref / xo_ref : (1, Hp, wo+1, cin)  even / odd W-phases of the padded
                      image, resident in VMEM across the row-tile axis.
    w_ref           : (9, cin, cout)      tap weights (k = kh*3 + kw), bf16.
    s_ref / b_ref   : (1, cout)           folded BN(+post_affine) scale/shift.
    o_ref           : (1, tho, wo, cout)  output tile (lane-dense last dim).
    acc_ref         : (tho*wo, cout)      f32 VMEM accumulator (scratch).
    """
    t = pl.program_id(1)
    row0 = pl.multiple_of(t * (2 * tho), 2 * tho)
    nrow = 2 * tho + 2  # 2*tho+1 rows are needed; +1 keeps the phase reshape exact

    # (nrow, wo+1, cin) -> (tho+1, 2, wo+1, cin): H phase split on a major dim.
    se = xe_ref[0, pl.ds(row0, nrow), :, :].reshape(tho + 1, 2, wo + 1, cin)
    so = xo_ref[0, pl.ds(row0, nrow), :, :].reshape(tho + 1, 2, wo + 1, cin)

    first = True
    for kh in range(3):
        hph, hoff = kh % 2, kh // 2
        re = se[hoff:hoff + tho, hph]            # (tho, wo+1, cin)
        ro = so[hoff:hoff + tho, hph]            # (tho, wo+1, cin)
        taps = (re[:, 0:wo, :],                  # kw = 0 : padded cols 2*w
                ro[:, 0:wo, :],                  # kw = 1 : padded cols 2*w + 1
                re[:, 1:wo + 1, :])              # kw = 2 : padded cols 2*w + 2
        for kw in range(3):
            contrib = jnp.dot(taps[kw].reshape(tho * wo, cin),
                              w_ref[kh * 3 + kw],
                              preferred_element_type=jnp.float32)
            if first:
                acc_ref[...] = contrib           # skip explicit zero-init
                first = False
            else:
                acc_ref[...] += contrib

    y = acc_ref[...] * s_ref[...] + b_ref[...]   # folded BN (+post_affine) in f32
    if apply_gelu:
        y = _gelu_tanh(y)
    o_ref[...] = y.reshape(1, tho, wo, cout).astype(o_ref.dtype)


# ---------------------------------------------------------------------------
# Wrapper
# ---------------------------------------------------------------------------
def _pick_row_tile(ho, wo, target_rows):
    """Largest divisor of `ho` whose M tile (tho*wo output rows) <= target."""
    best = 1
    for d in range(1, ho + 1):
        if ho % d == 0 and d * wo <= target_rows:
            best = d
    return best


def conv3x3_s2_bn(x_nhwc, w_oihw, scale, shift, *, apply_gelu, out_dtype,
                  target_rows=512):
    """3x3 conv, stride 2, pad 1, bias=False + folded BN affine (+ tanh GELU).

    x_nhwc: (B, H, W, Cin).  Returns NHWC (B, H//2, W//2, Cout) in out_dtype.
    On v7x (64 MiB VMEM) prefer target_rows=256.
    """
    B, H, W, Cin = x_nhwc.shape
    Cout = w_oihw.shape[0]
    Ho, Wo = H // 2, W // 2
    Hp = H + 2

    # Host layout plumbing (one fused XLA pass, ~1x input bytes): cast to bf16,
    # zero-pad, and de-interleave the W axis into even/odd stride-2 phases so
    # the kernel only does unit-stride slices of VMEM-resident slabs.
    xp = jnp.pad(x_nhwc.astype(jnp.bfloat16), ((0, 0), (1, 1), (1, 1), (0, 0)))
    x_even = xp[:, :, 0::2, :]                   # (B, Hp, Wo+1, Cin) cols 0,2,...
    x_odd = xp[:, :, 1::2, :]                    # (B, Hp, Wo+1, Cin) cols 1,3,...

    # (Cout, Cin, 3, 3) -> (9, Cin, Cout) bf16 MXU operand, k = kh*3 + kw.
    w9 = jnp.transpose(w_oihw, (2, 3, 1, 0)).reshape(9, Cin, Cout)
    w9 = w9.astype(jnp.bfloat16)

    tho = _pick_row_tile(Ho, Wo, target_rows)
    grid = (B, Ho // tho)

    kernel = partial(_conv3x3_s2_bn_kernel, tho=tho, wo=Wo, cin=Cin, cout=Cout,
                     apply_gelu=apply_gelu)
    return pl.pallas_call(
        kernel,
        out_shape=jax.ShapeDtypeStruct((B, Ho, Wo, Cout), out_dtype),
        grid=grid,
        in_specs=[
            # padded image phases: resident per batch element across row tiles
            pl.BlockSpec((1, Hp, Wo + 1, Cin), lambda b, t: (b, 0, 0, 0)),
            pl.BlockSpec((1, Hp, Wo + 1, Cin), lambda b, t: (b, 0, 0, 0)),
            # tap weights / folded scale+shift: resident across the whole grid
            pl.BlockSpec((9, Cin, Cout), lambda b, t: (0, 0, 0)),
            pl.BlockSpec((1, Cout), lambda b, t: (0, 0)),
            pl.BlockSpec((1, Cout), lambda b, t: (0, 0)),
        ],
        out_specs=pl.BlockSpec((1, tho, Wo, Cout), lambda b, t: (b, t, 0, 0)),
        scratch_shapes=[pltpu.VMEM((tho * Wo, Cout), jnp.float32)],
        compiler_params=pltpu.CompilerParams(
            dimension_semantics=("parallel", "parallel")),
    )(x_even, x_odd, w9,
      scale.reshape(1, Cout).astype(jnp.float32),
      shift.reshape(1, Cout).astype(jnp.float32))


def _fold_bn(gamma, beta, mean, var):
    s = gamma / jnp.sqrt(var + BN_EPS)
    return s, beta - mean * s


def conv_patch_embed_forward(x, p):
    """ConvPatchEmbed forward (patch_size == 4 path):
       pre_affine -> conv3x3(C, D//2, s2)+BN -> GELU -> conv3x3(D//2, D, s2)+BN
       -> post_affine -> flatten(2).transpose(1, 2)."""
    B, C, H, W = x.shape

    # NCHW -> NHWC with pre_affine folded into the same (tiny) fused XLA pass.
    x_nhwc = jnp.transpose(x, (0, 2, 3, 1))
    x_nhwc = x_nhwc * p['pre_alpha'].reshape(1, 1, 1, C) \
        + p['pre_beta'].reshape(1, 1, 1, C)

    s1, t1 = _fold_bn(p['bn1_gamma'], p['bn1_beta'], p['bn1_mean'], p['bn1_var'])
    y = conv3x3_s2_bn(x_nhwc, p['w1'], s1, t1, apply_gelu=True,
                      out_dtype=jnp.bfloat16)           # (B, H/2, W/2, D/2) NHWC

    s2, t2 = _fold_bn(p['bn2_gamma'], p['bn2_beta'], p['bn2_mean'], p['bn2_var'])
    s2 = s2 * p['post_alpha']                            # fold post_affine (exact)
    t2 = t2 * p['post_alpha'] + p['post_beta']
    z = conv3x3_s2_bn(y, p['w2'], s2, t2, apply_gelu=False,
                      out_dtype=jnp.float32)             # (B, H/4, W/4, D) NHWC

    D = p['w2'].shape[0]
    Hp, Wp = z.shape[1], z.shape[2]
    # NHWC row order (b, hp, wp) == flatten(2).transpose(1, 2) of the NCHW out.
    return z.reshape(B, Hp * Wp, D)


# ---------------------------------------------------------------------------
# References (for correctness check)
# ---------------------------------------------------------------------------
def _conv_bn_ref(x, w, gamma, beta, mean, var, *, bf16_operands):
    if bf16_operands:
        x = x.astype(jnp.bfloat16)
        w = w.astype(jnp.bfloat16)
    y = lax.conv_general_dilated(x, w, (2, 2), ((1, 1), (1, 1)),
                                 dimension_numbers=('NCHW', 'OIHW', 'NCHW'),
                                 preferred_element_type=jnp.float32)
    s = gamma / jnp.sqrt(var + BN_EPS)
    return y * s.reshape(1, -1, 1, 1) + (beta - mean * s).reshape(1, -1, 1, 1)


def ref_forward(x, p, *, bf16_operands):
    """Module-faithful reference (erf GELU).  With bf16_operands=True the conv
    operands are cast to bf16 (f32 accumulation) to match the kernel's MXU
    precision so a tight tolerance can be used."""
    xa = x * p['pre_alpha'].reshape(1, -1, 1, 1) + p['pre_beta'].reshape(1, -1, 1, 1)
    y = _conv_bn_ref(xa, p['w1'], p['bn1_gamma'], p['bn1_beta'],
                     p['bn1_mean'], p['bn1_var'], bf16_operands=bf16_operands)
    y = 0.5 * y * (1.0 + lax.erf(y * _INV_SQRT2))
    if bf16_operands:
        y = y.astype(jnp.bfloat16)   # kernel keeps the intermediate in bf16
    z = _conv_bn_ref(y, p['w2'], p['bn2_gamma'], p['bn2_beta'],
                     p['bn2_mean'], p['bn2_var'], bf16_operands=bf16_operands)
    z = z * p['post_alpha'].reshape(1, -1, 1, 1) + p['post_beta'].reshape(1, -1, 1, 1)
    B, D, Hp, Wp = z.shape
    return z.reshape(B, D, Hp * Wp).transpose(0, 2, 1)


# ---------------------------------------------------------------------------
if __name__ == "__main__":
    IMG, PATCH, IN_CHANS, EMBED, B = 16, 4, 4, 32, 2
    C1 = EMBED // 2

    key = jax.random.PRNGKey(0)
    ks = jax.random.split(key, 16)
    p = {
        # Affine(in_chans): alpha=1 / beta=0 in the module; perturbed for a
        # non-trivial test.
        'pre_alpha': 1.0 + 0.1 * jax.random.normal(ks[0], (IN_CHANS,)),
        'pre_beta': 0.1 * jax.random.normal(ks[1], (IN_CHANS,)),
        # conv3x3(IN_CHANS, EMBED//2, 2) weight (O, I, 3, 3), bias=False
        'w1': jax.random.normal(ks[2], (C1, IN_CHANS, 3, 3)) / math.sqrt(IN_CHANS * 9),
        'bn1_gamma': 1.0 + 0.1 * jax.random.normal(ks[3], (C1,)),
        'bn1_beta': 0.1 * jax.random.normal(ks[4], (C1,)),
        'bn1_mean': 0.1 * jax.random.normal(ks[5], (C1,)),
        'bn1_var': 0.5 + jax.random.uniform(ks[6], (C1,)),
        # conv3x3(EMBED//2, EMBED, 2)
        'w2': jax.random.normal(ks[7], (EMBED, C1, 3, 3)) / math.sqrt(C1 * 9),
        'bn2_gamma': 1.0 + 0.1 * jax.random.normal(ks[8], (EMBED,)),
        'bn2_beta': 0.1 * jax.random.normal(ks[9], (EMBED,)),
        'bn2_mean': 0.1 * jax.random.normal(ks[10], (EMBED,)),
        'bn2_var': 0.5 + jax.random.uniform(ks[11], (EMBED,)),
        # Affine(embed_dim)
        'post_alpha': 1.0 + 0.1 * jax.random.normal(ks[12], (EMBED,)),
        'post_beta': 0.1 * jax.random.normal(ks[13], (EMBED,)),
    }
    p = {k: v.astype(jnp.float32) for k, v in p.items()}

    x = jax.random.normal(ks[14], (B, IN_CHANS, IMG, IMG), jnp.float32)

    fwd = jax.jit(conv_patch_embed_forward)
    out = jax.block_until_ready(fwd(x, p))

    expected_shape = (B, (IMG // PATCH) * (IMG // PATCH), EMBED)
    assert out.shape == expected_shape, (out.shape, expected_shape)

    # Tight check vs a precision-matched (bf16 MXU operands) module reference;
    # loose sanity check vs the exact f32 module reference (bf16 + tanh-GELU
    # rounding only).
    ref_bf16 = jax.block_until_ready(
        jax.jit(partial(ref_forward, bf16_operands=True))(x, p))
    ref_f32 = jax.block_until_ready(
        jax.jit(partial(ref_forward, bf16_operands=False))(x, p))
    err_tight = float(jnp.max(jnp.abs(out - ref_bf16)))
    err_loose = float(jnp.max(jnp.abs(out - ref_f32)))

    if not (err_tight < 5e-2 and err_loose < 2e-1):
        raise AssertionError(
            f"Pallas vs reference mismatch: bf16-matched err={err_tight}, "
            f"f32 err={err_loose}")

    print("KERNEL_OK")
</pallas_src>

<mosaic_0001>
module attributes {stable_mosaic.version = 11 : i64} {
  func.func @_conv3x3_s2_bn_kernel(%arg0: i32, %arg1: i32, %arg2: memref<1x18x9x4xbf16, #tpu.memory_space<vmem>>, %arg3: memref<1x18x9x4xbf16, #tpu.memory_space<vmem>>, %arg4: memref<9x4x16xbf16, #tpu.memory_space<vmem>>, %arg5: memref<1x16xf32, #tpu.memory_space<vmem>>, %arg6: memref<1x16xf32, #tpu.memory_space<vmem>>, %arg7: memref<1x8x8x16xbf16, #tpu.memory_space<vmem>>, %arg8: memref<64x16xf32, #tpu.memory_space<vmem>>) attributes {dimension_semantics = [#tpu.dimension_semantics<parallel>, #tpu.dimension_semantics<parallel>], iteration_bounds = array<i64: 2, 1>, scalar_prefetch = 0 : i64, scratch_operands = 1 : i64, tpu.core_type = #tpu.core_type<tc>, window_params = [{transform_indices = @transform_0, window_bounds = array<i64: 1, 18, 9, 4>}, {transform_indices = @transform_1, window_bounds = array<i64: 1, 18, 9, 4>}, {pipeline_mode = #tpu.pipeline_mode<synchronous>, transform_indices = @transform_2, window_bounds = array<i64: 9, 4, 16>}, {pipeline_mode = #tpu.pipeline_mode<synchronous>, transform_indices = @transform_3, window_bounds = array<i64: 1, 16>}, {pipeline_mode = #tpu.pipeline_mode<synchronous>, transform_indices = @transform_4, window_bounds = array<i64: 1, 16>}, {transform_indices = @transform_5, window_bounds = array<i64: 1, 8, 8, 16>}]} {
    %c16_i32 = arith.constant 16 : i32
    %0 = arith.muli %arg1, %c16_i32 : i32
    %1 = tpu.assume_multiple %0, 16 : i32
    %c0 = arith.constant 0 : index
    %2 = arith.index_cast %1 : i32 to index
    %c0_0 = arith.constant 0 : index
    %c0_1 = arith.constant 0 : index
    %3 = vector.load %arg2[%c0, %2, %c0_0, %c0_1] : memref<1x18x9x4xbf16, #tpu.memory_space<vmem>>, vector<1x18x9x4xbf16>
    %4 = vector.shape_cast %3 : vector<1x18x9x4xbf16> to vector<18x9x4xbf16>
    %5 = vector.shape_cast %4 : vector<18x9x4xbf16> to vector<9x2x9x4xbf16>
    %c0_2 = arith.constant 0 : index
    %6 = arith.index_cast %1 : i32 to index
    %c0_3 = arith.constant 0 : index
    %c0_4 = arith.constant 0 : index
    %7 = vector.load %arg3[%c0_2, %6, %c0_3, %c0_4] : memref<1x18x9x4xbf16, #tpu.memory_space<vmem>>, vector<1x18x9x4xbf16>
    %8 = vector.shape_cast %7 : vector<1x18x9x4xbf16> to vector<18x9x4xbf16>
    %9 = vector.shape_cast %8 : vector<18x9x4xbf16> to vector<9x2x9x4xbf16>
    %10 = vector.extract_strided_slice %5 {offsets = [0, 0, 0, 0], sizes = [8, 1, 9, 4], strides = [1, 1, 1, 1]} : vector<9x2x9x4xbf16> to vector<8x1x9x4xbf16>
    %11 = vector.shape_cast %10 : vector<8x1x9x4xbf16> to vector<8x9x4xbf16>
    %12 = vector.extract_strided_slice %9 {offsets = [0, 0, 0, 0], sizes = [8, 1, 9, 4], strides = [1, 1, 1, 1]} : vector<9x2x9x4xbf16> to vector<8x1x9x4xbf16>
    %13 = vector.shape_cast %12 : vector<8x1x9x4xbf16> to vector<8x9x4xbf16>
    %14 = vector.extract_strided_slice %11 {offsets = [0, 0, 0], sizes = [8, 8, 4], strides = [1, 1, 1]} : vector<8x9x4xbf16> to vector<8x8x4xbf16>
    %15 = vector.extract_strided_slice %13 {offsets = [0, 0, 0], sizes = [8, 8, 4], strides = [1, 1, 1]} : vector<8x9x4xbf16> to vector<8x8x4xbf16>
    %16 = vector.extract_strided_slice %11 {offsets = [0, 1, 0], sizes = [8, 8, 4], strides = [1, 1, 1]} : vector<8x9x4xbf16> to vector<8x8x4xbf16>
    %17 = vector.shape_cast %14 : vector<8x8x4xbf16> to vector<64x4xbf16>
    %c0_5 = arith.constant 0 : index
    %c0_6 = arith.constant 0 : index
    %c0_7 = arith.constant 0 : index
    %18 = vector.load %arg4[%c0_5, %c0_6, %c0_7] : memref<9x4x16xbf16, #tpu.memory_space<vmem>>, vector<1x4x16xbf16>
    %19 = vector.shape_cast %18 : vector<1x4x16xbf16> to vector<4x16xbf16>
    %cst = arith.constant dense<0.000000e+00> : vector<64x16xf32>
    %20 = tpu.matmul %17, %19, %cst {dimension_numbers = #tpu.dot_dimension_numbers<[1], [0], [0], [1], [0, 0, 1, 1], [], []>} : vector<64x4xbf16>, vector<4x16xbf16>, vector<64x16xf32> -> vector<64x16xf32>
    %c0_8 = arith.constant 0 : index
    %c0_9 = arith.constant 0 : index
    %21 = vector.load %arg8[%c0_8, %c0_9] : memref<64x16xf32, #tpu.memory_space<vmem>>, vector<64x16xf32>
    tpu.vector_store %arg8[%c0_8, %c0_9], %20 {strides = array<i32>} : memref<64x16xf32, #tpu.memory_space<vmem>>, vector<64x16xf32>,
    %22 = vector.shape_cast %15 : vector<8x8x4xbf16> to vector<64x4xbf16>
    %c1 = arith.constant 1 : index
    %c0_10 = arith.constant 0 : index
    %c0_11 = arith.constant 0 : index
    %23 = vector.load %arg4[%c1, %c0_10, %c0_11] : memref<9x4x16xbf16, #tpu.memory_space<vmem>>, vector<1x4x16xbf16>
    %24 = vector.shape_cast %23 : vector<1x4x16xbf16> to vector<4x16xbf16>
    %cst_12 = arith.constant dense<0.000000e+00> : vector<64x16xf32>
    %25 = tpu.matmul %22, %24, %cst_12 {dimension_numbers = #tpu.dot_dimension_numbers<[1], [0], [0], [1], [0, 0, 1, 1], [], []>} : vector<64x4xbf16>, vector<4x16xbf16>, vector<64x16xf32> -> vector<64x16xf32>
    %c0_13 = arith.constant 0 : index
    %c0_14 = arith.constant 0 : index
    %26 = vector.load %arg8[%c0_13, %c0_14] : memref<64x16xf32, #tpu.memory_space<vmem>>, vector<64x16xf32>
    %27 = arith.addf %26, %25 : vector<64x16xf32>
    %c0_15 = arith.constant 0 : index
    %c0_16 = arith.constant 0 : index
    %28 = vector.load %arg8[%c0_15, %c0_16] : memref<64x16xf32, #tpu.memory_space<vmem>>, vector<64x16xf32>
    tpu.vector_store %arg8[%c0_15, %c0_16], %27 {strides = array<i32>} : memref<64x16xf32, #tpu.memory_space<vmem>>, vector<64x16xf32>,
    %29 = vector.shape_cast %16 : vector<8x8x4xbf16> to vector<64x4xbf16>
    %c2 = arith.constant 2 : index
    %c0_17 = arith.constant 0 : index
    %c0_18 = arith.constant 0 : index
    %30 = vector.load %arg4[%c2, %c0_17, %c0_18] : memref<9x4x16xbf16, #tpu.memory_space<vmem>>, vector<1x4x16xbf16>
    %31 = vector.shape_cast %30 : vector<1x4x16xbf16> to vector<4x16xbf16>
    %cst_19 = arith.constant dense<0.000000e+00> : vector<64x16xf32>
    %32 = tpu.matmul %29, %31, %cst_19 {dimension_numbers = #tpu.dot_dimension_numbers<[1], [0], [0], [1], [0, 0, 1, 1], [], []>} : vector<64x4xbf16>, vector<4x16xbf16>, vector<64x16xf32> -> vector<64x16xf32>
    %c0_20 = arith.constant 0 : index
    %c0_21 = arith.constant 0 : index
    %33 = vector.load %arg8[%c0_20, %c0_21] : memref<64x16xf32, #tpu.memory_space<vmem>>, vector<64x16xf32>
    %34 = arith.addf %33, %32 : vector<64x16xf32>
    %c0_22 = arith.constant 0 : index
    %c0_23 = arith.constant 0 : index
    %35 = vector.load %arg8[%c0_22, %c0_23] : memref<64x16xf32, #tpu.memory_space<vmem>>, vector<64x16xf32>
    tpu.vector_store %arg8[%c0_22, %c0_23], %34 {strides = array<i32>} : memref<64x16xf32, #tpu.memory_space<vmem>>, vector<64x16xf32>,
    %36 = vector.extract_strided_slice %5 {offsets = [0, 1, 0, 0], sizes = [8, 1, 9, 4], strides = [1, 1, 1, 1]} : vector<9x2x9x4xbf16> to vector<8x1x9x4xbf16>
    %37 = vector.shape_cast %36 : vector<8x1x9x4xbf16> to vector<8x9x4xbf16>
    %38 = vector.extract_strided_slice %9 {offsets = [0, 1, 0, 0], sizes = [8, 1, 9, 4], strides = [1, 1, 1, 1]} : vector<9x2x9x4xbf16> to vector<8x1x9x4xbf16>
    %39 = vector.shape_cast %38 : vector<8x1x9x4xbf16> to vector<8x9x4xbf16>
    %40 = vector.extract_strided_slice %37 {offsets = [0, 0, 0], sizes = [8, 8, 4], strides = [1, 1, 1]} : vector<8x9x4xbf16> to vector<8x8x4xbf16>
    %41 = vector.extract_strided_slice %39 {offsets = [0, 0, 0], sizes = [8, 8, 4], strides = [1, 1, 1]} : vector<8x9x4xbf16> to vector<8x8x4xbf16>
    %42 = vector.extract_strided_slice %37 {offsets = [0, 1, 0], sizes = [8, 8, 4], strides = [1, 1, 1]} : vector<8x9x4xbf16> to vector<8x8x4xbf16>
    %43 = vector.shape_cast %40 : vector<8x8x4xbf16> to vector<64x4xbf16>
    %c3 = arith.constant 3 : index
    %c0_24 = arith.constant 0 : index
    %c0_25 = arith.constant 0 : index
    %44 = vector.load %arg4[%c3, %c0_24, %c0_25] : memref<9x4x16xbf16, #tpu.memory_space<vmem>>, vector<1x4x16xbf16>
    %45 = vector.shape_cast %44 : vector<1x4x16xbf16> to vector<4x16xbf16>
    %cst_26 = arith.constant dense<0.000000e+00> : vector<64x16xf32>
    %46 = tpu.matmul %43, %45, %cst_26 {dimension_numbers = #tpu.dot_dimension_numbers<[1], [0], [0], [1], [0, 0, 1, 1], [], []>} : vector<64x4xbf16>, vector<4x16xbf16>, vector<64x16xf32> -> vector<64x16xf32>
    %c0_27 = arith.constant 0 : index
    %c0_28 = arith.constant 0 : index
    %47 = vector.load %arg8[%c0_27, %c0_28] : memref<64x16xf32, #tpu.memory_space<vmem>>, vector<64x16xf32>
    %48 = arith.addf %47, %46 : vector<64x16xf32>
    %c0_29 = arith.constant 0 : index
    %c0_30 = arith.constant 0 : index
    %49 = vector.load %arg8[%c0_29, %c0_30] : memref<64x16xf32, #tpu.memory_space<vmem>>, vector<64x16xf32>
    tpu.vector_store %arg8[%c0_29, %c0_30], %48 {strides = array<i32>} : memref<64x16xf32, #tpu.memory_space<vmem>>, vector<64x16xf32>,
    %50 = vector.shape_cast %41 : vector<8x8x4xbf16> to vector<64x4xbf16>
    %c4 = arith.constant 4 : index
    %c0_31 = arith.constant 0 : index
    %c0_32 = arith.constant 0 : index
    %51 = vector.load %arg4[%c4, %c0_31, %c0_32] : memref<9x4x16xbf16, #tpu.memory_space<vmem>>, vector<1x4x16xbf16>
    %52 = vector.shape_cast %51 : vector<1x4x16xbf16> to vector<4x16xbf16>
    %cst_33 = arith.constant dense<0.000000e+00> : vector<64x16xf32>
    %53 = tpu.matmul %50, %52, %cst_33 {dimension_numbers = #tpu.dot_dimension_numbers<[1], [0], [0], [1], [0, 0, 1, 1], [], []>} : vector<64x4xbf16>, vector<4x16xbf16>, vector<64x16xf32> -> vector<64x16xf32>
    %c0_34 = arith.constant 0 : index
    %c0_35 = arith.constant 0 : index
    %54 = vector.load %arg8[%c0_34, %c0_35] : memref<64x16xf32, #tpu.memory_space<vmem>>, vector<64x16xf32>
    %55 = arith.addf %54, %53 : vector<64x16xf32>
    %c0_36 = arith.constant 0 : index
    %c0_37 = arith.constant 0 : index
    %56 = vector.load %arg8[%c0_36, %c0_37] : memref<64x16xf32, #tpu.memory_space<vmem>>, vector<64x16xf32>
    tpu.vector_store %arg8[%c0_36, %c0_37], %55 {strides = array<i32>} : memref<64x16xf32, #tpu.memory_space<vmem>>, vector<64x16xf32>,
    %57 = vector.shape_cast %42 : vector<8x8x4xbf16> to vector<64x4xbf16>
    %c5 = arith.constant 5 : index
    %c0_38 = arith.constant 0 : index
    %c0_39 = arith.constant 0 : index
    %58 = vector.load %arg4[%c5, %c0_38, %c0_39] : memref<9x4x16xbf16, #tpu.memory_space<vmem>>, vector<1x4x16xbf16>
    %59 = vector.shape_cast %58 : vector<1x4x16xbf16> to vector<4x16xbf16>
    %cst_40 = arith.constant dense<0.000000e+00> : vector<64x16xf32>
    %60 = tpu.matmul %57, %59, %cst_40 {dimension_numbers = #tpu.dot_dimension_numbers<[1], [0], [0], [1], [0, 0, 1, 1], [], []>} : vector<64x4xbf16>, vector<4x16xbf16>, vector<64x16xf32> -> vector<64x16xf32>
    %c0_41 = arith.constant 0 : index
    %c0_42 = arith.constant 0 : index
    %61 = vector.load %arg8[%c0_41, %c0_42] : memref<64x16xf32, #tpu.memory_space<vmem>>, vector<64x16xf32>
    %62 = arith.addf %61, %60 : vector<64x16xf32>
    %c0_43 = arith.constant 0 : index
    %c0_44 = arith.constant 0 : index
    %63 = vector.load %arg8[%c0_43, %c0_44] : memref<64x16xf32, #tpu.memory_space<vmem>>, vector<64x16xf32>
    tpu.vector_store %arg8[%c0_43, %c0_44], %62 {strides = array<i32>} : memref<64x16xf32, #tpu.memory_space<vmem>>, vector<64x16xf32>,
    %64 = vector.extract_strided_slice %5 {offsets = [1, 0, 0, 0], sizes = [8, 1, 9, 4], strides = [1, 1, 1, 1]} : vector<9x2x9x4xbf16> to vector<8x1x9x4xbf16>
    %65 = vector.shape_cast %64 : vector<8x1x9x4xbf16> to vector<8x9x4xbf16>
    %66 = vector.extract_strided_slice %9 {offsets = [1, 0, 0, 0], sizes = [8, 1, 9, 4], strides = [1, 1, 1, 1]} : vector<9x2x9x4xbf16> to vector<8x1x9x4xbf16>
    %67 = vector.shape_cast %66 : vector<8x1x9x4xbf16> to vector<8x9x4xbf16>
    %68 = vector.extract_strided_slice %65 {offsets = [0, 0, 0], sizes = [8, 8, 4], strides = [1, 1, 1]} : vector<8x9x4xbf16> to vector<8x8x4xbf16>
    %69 = vector.extract_strided_slice %67 {offsets = [0, 0, 0], sizes = [8, 8, 4], strides = [1, 1, 1]} : vector<8x9x4xbf16> to vector<8x8x4xbf16>
    %70 = vector.extract_strided_slice %65 {offsets = [0, 1, 0], sizes = [8, 8, 4], strides = [1, 1, 1]} : vector<8x9x4xbf16> to vector<8x8x4xbf16>
    %71 = vector.shape_cast %68 : vector<8x8x4xbf16> to vector<64x4xbf16>
    %c6 = arith.constant 6 : index
    %c0_45 = arith.constant 0 : index
    %c0_46 = arith.constant 0 : index
    %72 = vector.load %arg4[%c6, %c0_45, %c0_46] : memref<9x4x16xbf16, #tpu.memory_space<vmem>>, vector<1x4x16xbf16>
    %73 = vector.shape_cast %72 : vector<1x4x16xbf16> to vector<4x16xbf16>
    %cst_47 = arith.constant dense<0.000000e+00> : vector<64x16xf32>
    %74 = tpu.matmul %71, %73, %cst_47 {dimension_numbers = #tpu.dot_dimension_numbers<[1], [0], [0], [1], [0, 0, 1, 1], [], []>} : vector<64x4xbf16>, vector<4x16xbf16>, vector<64x16xf32> -> vector<64x16xf32>
    %c0_48 = arith.constant 0 : index
    %c0_49 = arith.constant 0 : index
    %75 = vector.load %arg8[%c0_48, %c0_49] : memref<64x16xf32, #tpu.memory_space<vmem>>, vector<64x16xf32>
    %76 = arith.addf %75, %74 : vector<64x16xf32>
    %c0_50 = arith.constant 0 : index
    %c0_51 = arith.constant 0 : index
    %77 = vector.load %arg8[%c0_50, %c0_51] : memref<64x16xf32, #tpu.memory_space<vmem>>, vector<64x16xf32>
    tpu.vector_store %arg8[%c0_50, %c0_51], %76 {strides = array<i32>} : memref<64x16xf32, #tpu.memory_space<vmem>>, vector<64x16xf32>,
    %78 = vector.shape_cast %69 : vector<8x8x4xbf16> to vector<64x4xbf16>
    %c7 = arith.constant 7 : index
    %c0_52 = arith.constant 0 : index
    %c0_53 = arith.constant 0 : index
    %79 = vector.load %arg4[%c7, %c0_52, %c0_53] : memref<9x4x16xbf16, #tpu.memory_space<vmem>>, vector<1x4x16xbf16>
    %80 = vector.shape_cast %79 : vector<1x4x16xbf16> to vector<4x16xbf16>
    %cst_54 = arith.constant dense<0.000000e+00> : vector<64x16xf32>
    %81 = tpu.matmul %78, %80, %cst_54 {dimension_numbers = #tpu.dot_dimension_numbers<[1], [0], [0], [1], [0, 0, 1, 1], [], []>} : vector<64x4xbf16>, vector<4x16xbf16>, vector<64x16xf32> -> vector<64x16xf32>
    %c0_55 = arith.constant 0 : index
    %c0_56 = arith.constant 0 : index
    %82 = vector.load %arg8[%c0_55, %c0_56] : memref<64x16xf32, #tpu.memory_space<vmem>>, vector<64x16xf32>
    %83 = arith.addf %82, %81 : vector<64x16xf32>
    %c0_57 = arith.constant 0 : index
    %c0_58 = arith.constant 0 : index
    %84 = vector.load %arg8[%c0_57, %c0_58] : memref<64x16xf32, #tpu.memory_space<vmem>>, vector<64x16xf32>
    tpu.vector_store %arg8[%c0_57, %c0_58], %83 {strides = array<i32>} : memref<64x16xf32, #tpu.memory_space<vmem>>, vector<64x16xf32>,
    %85 = vector.shape_cast %70 : vector<8x8x4xbf16> to vector<64x4xbf16>
    %c8 = arith.constant 8 : index
    %c0_59 = arith.constant 0 : index
    %c0_60 = arith.constant 0 : index
    %86 = vector.load %arg4[%c8, %c0_59, %c0_60] : memref<9x4x16xbf16, #tpu.memory_space<vmem>>, vector<1x4x16xbf16>
    %87 = vector.shape_cast %86 : vector<1x4x16xbf16> to vector<4x16xbf16>
    %cst_61 = arith.constant dense<0.000000e+00> : vector<64x16xf32>
    %88 = tpu.matmul %85, %87, %cst_61 {dimension_numbers = #tpu.dot_dimension_numbers<[1], [0], [0], [1], [0, 0, 1, 1], [], []>} : vector<64x4xbf16>, vector<4x16xbf16>, vector<64x16xf32> -> vector<64x16xf32>
    %c0_62 = arith.constant 0 : index
    %c0_63 = arith.constant 0 : index
    %89 = vector.load %arg8[%c0_62, %c0_63] : memref<64x16xf32, #tpu.memory_space<vmem>>, vector<64x16xf32>
    %90 = arith.addf %89, %88 : vector<64x16xf32>
    %c0_64 = arith.constant 0 : index
    %c0_65 = arith.constant 0 : index
    %91 = vector.load %arg8[%c0_64, %c0_65] : memref<64x16xf32, #tpu.memory_space<vmem>>, vector<64x16xf32>
    tpu.vector_store %arg8[%c0_64, %c0_65], %90 {strides = array<i32>} : memref<64x16xf32, #tpu.memory_space<vmem>>, vector<64x16xf32>,
    %c0_66 = arith.constant 0 : index
    %c0_67 = arith.constant 0 : index
    %92 = vector.load %arg8[%c0_66, %c0_67] : memref<64x16xf32, #tpu.memory_space<vmem>>, vector<64x16xf32>
    %c0_68 = arith.constant 0 : index
    %c0_69 = arith.constant 0 : index
    %93 = vector.load %arg5[%c0_68, %c0_69] : memref<1x16xf32, #tpu.memory_space<vmem>>, vector<1x16xf32>
    %94 = vector.broadcast %93 : vector<1x16xf32> to vector<64x16xf32>
    %95 = arith.mulf %92, %94 : vector<64x16xf32>
    %c0_70 = arith.constant 0 : index
    %c0_71 = arith.constant 0 : index
    %96 = vector.load %arg6[%c0_70, %c0_71] : memref<1x16xf32, #tpu.memory_space<vmem>>, vector<1x16xf32>
    %97 = vector.broadcast %96 : vector<1x16xf32> to vector<64x16xf32>
    %98 = arith.addf %95, %97 : vector<64x16xf32>
    %cst_72 = arith.constant 5.000000e-01 : f32
    %99 = vector.broadcast %cst_72 : f32 to vector<64x16xf32>
    %100 = arith.mulf %99, %98 : vector<64x16xf32>
    %101 = arith.mulf %98, %98 : vector<64x16xf32>
    %102 = arith.mulf %101, %98 : vector<64x16xf32>
    %cst_73 = arith.constant 4.471500e-02 : f32
    %103 = vector.broadcast %cst_73 : f32 to vector<64x16xf32>
    %104 = arith.mulf %103, %102 : vector<64x16xf32>
    %105 = arith.addf %98, %104 : vector<64x16xf32>
    %cst_74 = arith.constant 0.797884583 : f32
    %106 = vector.broadcast %cst_74 : f32 to vector<64x16xf32>
    %107 = arith.mulf %106, %105 : vector<64x16xf32>
    %108 = math.tanh %107 : vector<64x16xf32>
    %cst_75 = arith.constant 1.000000e+00 : f32
    %109 = vector.broadcast %cst_75 : f32 to vector<64x16xf32>
    %110 = arith.addf %109, %108 : vector<64x16xf32>
    %111 = arith.mulf %100, %110 : vector<64x16xf32>
    %112 = vector.shape_cast %111 : vector<64x16xf32> to vector<1x8x8x16xf32>
    %113 = arith.truncf %112 : vector<1x8x8x16xf32> to vector<1x8x8x16xbf16>
    %c0_76 = arith.constant 0 : index
    %c0_77 = arith.constant 0 : index
    %c0_78 = arith.constant 0 : index
    %c0_79 = arith.constant 0 : index
    %114 = vector.load %arg7[%c0_76, %c0_77, %c0_78, %c0_79] : memref<1x8x8x16xbf16, #tpu.memory_space<vmem>>, vector<1x8x8x16xbf16>
    tpu.vector_store %arg7[%c0_76, %c0_77, %c0_78, %c0_79], %113 {strides = array<i32>} : memref<1x8x8x16xbf16, #tpu.memory_space<vmem>>, vector<1x8x8x16xbf16>,
    return
  }
  func.func @transform_0(%arg0: i32, %arg1: i32) -> (i32, i32, i32, i32) {
    %c0_i32 = arith.constant 0 : i32
    %c0_i32_0 = arith.constant 0 : i32
    %c0_i32_1 = arith.constant 0 : i32
    %c0_i32_2 = arith.constant 0 : i32
    return %arg0, %c0_i32, %c0_i32_0, %c0_i32_1 : i32, i32, i32, i32
  }
  func.func @transform_1(%arg0: i32, %arg1: i32) -> (i32, i32, i32, i32) {
    %c0_i32 = arith.constant 0 : i32
    %c0_i32_0 = arith.constant 0 : i32
    %c0_i32_1 = arith.constant 0 : i32
    %c0_i32_2 = arith.constant 0 : i32
    return %arg0, %c0_i32, %c0_i32_0, %c0_i32_1 : i32, i32, i32, i32
  }
  func.func @transform_2(%arg0: i32, %arg1: i32) -> (i32, i32, i32) {
    %c0_i32 = arith.constant 0 : i32
    %c0_i32_0 = arith.constant 0 : i32
    %c0_i32_1 = arith.constant 0 : i32
    %c0_i32_2 = arith.constant 0 : i32
    return %c0_i32, %c0_i32_0, %c0_i32_1 : i32, i32, i32
  }
  func.func @transform_3(%arg0: i32, %arg1: i32) -> (i32, i32) {
    %c0_i32 = arith.constant 0 : i32
    %c0_i32_0 = arith.constant 0 : i32
    %c0_i32_1 = arith.constant 0 : i32
    return %c0_i32, %c0_i32_0 : i32, i32
  }
  func.func @transform_4(%arg0: i32, %arg1: i32) -> (i32, i32) {
    %c0_i32 = arith.constant 0 : i32
    %c0_i32_0 = arith.constant 0 : i32
    %c0_i32_1 = arith.constant 0 : i32
    return %c0_i32, %c0_i32_0 : i32, i32
  }
  func.func @transform_5(%arg0: i32, %arg1: i32) -> (i32, i32, i32, i32) {
    %c0_i32 = arith.constant 0 : i32
    %c0_i32_0 = arith.constant 0 : i32
    %c0_i32_1 = arith.constant 0 : i32
    return %arg0, %arg1, %c0_i32, %c0_i32_0 : i32, i32, i32, i32
  }
}

module attributes {stable_mosaic.version = 11 : i64} {
  func.func @_conv3x3_s2_bn_kernel(%arg0: i32, %arg1: i32, %arg2: memref<1x10x5x16xbf16, #tpu.memory_space<vmem>>, %arg3: memref<1x10x5x16xbf16, #tpu.memory_space<vmem>>, %arg4: memref<9x16x32xbf16, #tpu.memory_space<vmem>>, %arg5: memref<1x32xf32, #tpu.memory_space<vmem>>, %arg6: memref<1x32xf32, #tpu.memory_space<vmem>>, %arg7: memref<1x4x4x32xf32, #tpu.memory_space<vmem>>, %arg8: memref<16x32xf32, #tpu.memory_space<vmem>>) attributes {dimension_semantics = [#tpu.dimension_semantics<parallel>, #tpu.dimension_semantics<parallel>], iteration_bounds = array<i64: 2, 1>, scalar_prefetch = 0 : i64, scratch_operands = 1 : i64, tpu.core_type = #tpu.core_type<tc>, window_params = [{transform_indices = @transform_0, window_bounds = array<i64: 1, 10, 5, 16>}, {transform_indices = @transform_1, window_bounds = array<i64: 1, 10, 5, 16>}, {pipeline_mode = #tpu.pipeline_mode<synchronous>, transform_indices = @transform_2, window_bounds = array<i64: 9, 16, 32>}, {pipeline_mode = #tpu.pipeline_mode<synchronous>, transform_indices = @transform_3, window_bounds = array<i64: 1, 32>}, {pipeline_mode = #tpu.pipeline_mode<synchronous>, transform_indices = @transform_4, window_bounds = array<i64: 1, 32>}, {transform_indices = @transform_5, window_bounds = array<i64: 1, 4, 4, 32>}]} {
    %c8_i32 = arith.constant 8 : i32
    %0 = arith.muli %arg1, %c8_i32 : i32
    %1 = tpu.assume_multiple %0, 8 : i32
    %c0 = arith.constant 0 : index
    %2 = arith.index_cast %1 : i32 to index
    %c0_0 = arith.constant 0 : index
    %c0_1 = arith.constant 0 : index
    %3 = vector.load %arg2[%c0, %2, %c0_0, %c0_1] : memref<1x10x5x16xbf16, #tpu.memory_space<vmem>>, vector<1x10x5x16xbf16>
    %4 = vector.shape_cast %3 : vector<1x10x5x16xbf16> to vector<10x5x16xbf16>
    %5 = vector.shape_cast %4 : vector<10x5x16xbf16> to vector<5x2x5x16xbf16>
    %c0_2 = arith.constant 0 : index
    %6 = arith.index_cast %1 : i32 to index
    %c0_3 = arith.constant 0 : index
    %c0_4 = arith.constant 0 : index
    %7 = vector.load %arg3[%c0_2, %6, %c0_3, %c0_4] : memref<1x10x5x16xbf16, #tpu.memory_space<vmem>>, vector<1x10x5x16xbf16>
    %8 = vector.shape_cast %7 : vector<1x10x5x16xbf16> to vector<10x5x16xbf16>
    %9 = vector.shape_cast %8 : vector<10x5x16xbf16> to vector<5x2x5x16xbf16>
    %10 = vector.extract_strided_slice %5 {offsets = [0, 0, 0, 0], sizes = [4, 1, 5, 16], strides = [1, 1, 1, 1]} : vector<5x2x5x16xbf16> to vector<4x1x5x16xbf16>
    %11 = vector.shape_cast %10 : vector<4x1x5x16xbf16> to vector<4x5x16xbf16>
    %12 = vector.extract_strided_slice %9 {offsets = [0, 0, 0, 0], sizes = [4, 1, 5, 16], strides = [1, 1, 1, 1]} : vector<5x2x5x16xbf16> to vector<4x1x5x16xbf16>
    %13 = vector.shape_cast %12 : vector<4x1x5x16xbf16> to vector<4x5x16xbf16>
    %14 = vector.extract_strided_slice %11 {offsets = [0, 0, 0], sizes = [4, 4, 16], strides = [1, 1, 1]} : vector<4x5x16xbf16> to vector<4x4x16xbf16>
    %15 = vector.extract_strided_slice %13 {offsets = [0, 0, 0], sizes = [4, 4, 16], strides = [1, 1, 1]} : vector<4x5x16xbf16> to vector<4x4x16xbf16>
    %16 = vector.extract_strided_slice %11 {offsets = [0, 1, 0], sizes = [4, 4, 16], strides = [1, 1, 1]} : vector<4x5x16xbf16> to vector<4x4x16xbf16>
    %17 = vector.shape_cast %14 : vector<4x4x16xbf16> to vector<16x16xbf16>
    %c0_5 = arith.constant 0 : index
    %c0_6 = arith.constant 0 : index
    %c0_7 = arith.constant 0 : index
    %18 = vector.load %arg4[%c0_5, %c0_6, %c0_7] : memref<9x16x32xbf16, #tpu.memory_space<vmem>>, vector<1x16x32xbf16>
    %19 = vector.shape_cast %18 : vector<1x16x32xbf16> to vector<16x32xbf16>
    %cst = arith.constant dense<0.000000e+00> : vector<16x32xf32>
    %20 = tpu.matmul %17, %19, %cst {dimension_numbers = #tpu.dot_dimension_numbers<[1], [0], [0], [1], [0, 0, 1, 1], [], []>} : vector<16x16xbf16>, vector<16x32xbf16>, vector<16x32xf32> -> vector<16x32xf32>
    %c0_8 = arith.constant 0 : index
    %c0_9 = arith.constant 0 : index
    %21 = vector.load %arg8[%c0_8, %c0_9] : memref<16x32xf32, #tpu.memory_space<vmem>>, vector<16x32xf32>
    tpu.vector_store %arg8[%c0_8, %c0_9], %20 {strides = array<i32>} : memref<16x32xf32, #tpu.memory_space<vmem>>, vector<16x32xf32>,
    %22 = vector.shape_cast %15 : vector<4x4x16xbf16> to vector<16x16xbf16>
    %c1 = arith.constant 1 : index
    %c0_10 = arith.constant 0 : index
    %c0_11 = arith.constant 0 : index
    %23 = vector.load %arg4[%c1, %c0_10, %c0_11] : memref<9x16x32xbf16, #tpu.memory_space<vmem>>, vector<1x16x32xbf16>
    %24 = vector.shape_cast %23 : vector<1x16x32xbf16> to vector<16x32xbf16>
    %cst_12 = arith.constant dense<0.000000e+00> : vector<16x32xf32>
    %25 = tpu.matmul %22, %24, %cst_12 {dimension_numbers = #tpu.dot_dimension_numbers<[1], [0], [0], [1], [0, 0, 1, 1], [], []>} : vector<16x16xbf16>, vector<16x32xbf16>, vector<16x32xf32> -> vector<16x32xf32>
    %c0_13 = arith.constant 0 : index
    %c0_14 = arith.constant 0 : index
    %26 = vector.load %arg8[%c0_13, %c0_14] : memref<16x32xf32, #tpu.memory_space<vmem>>, vector<16x32xf32>
    %27 = arith.addf %26, %25 : vector<16x32xf32>
    %c0_15 = arith.constant 0 : index
    %c0_16 = arith.constant 0 : index
    %28 = vector.load %arg8[%c0_15, %c0_16] : memref<16x32xf32, #tpu.memory_space<vmem>>, vector<16x32xf32>
    tpu.vector_store %arg8[%c0_15, %c0_16], %27 {strides = array<i32>} : memref<16x32xf32, #tpu.memory_space<vmem>>, vector<16x32xf32>,
    %29 = vector.shape_cast %16 : vector<4x4x16xbf16> to vector<16x16xbf16>
    %c2 = arith.constant 2 : index
    %c0_17 = arith.constant 0 : index
    %c0_18 = arith.constant 0 : index
    %30 = vector.load %arg4[%c2, %c0_17, %c0_18] : memref<9x16x32xbf16, #tpu.memory_space<vmem>>, vector<1x16x32xbf16>
    %31 = vector.shape_cast %30 : vector<1x16x32xbf16> to vector<16x32xbf16>
    %cst_19 = arith.constant dense<0.000000e+00> : vector<16x32xf32>
    %32 = tpu.matmul %29, %31, %cst_19 {dimension_numbers = #tpu.dot_dimension_numbers<[1], [0], [0], [1], [0, 0, 1, 1], [], []>} : vector<16x16xbf16>, vector<16x32xbf16>, vector<16x32xf32> -> vector<16x32xf32>
    %c0_20 = arith.constant 0 : index
    %c0_21 = arith.constant 0 : index
    %33 = vector.load %arg8[%c0_20, %c0_21] : memref<16x32xf32, #tpu.memory_space<vmem>>, vector<16x32xf32>
    %34 = arith.addf %33, %32 : vector<16x32xf32>
    %c0_22 = arith.constant 0 : index
    %c0_23 = arith.constant 0 : index
    %35 = vector.load %arg8[%c0_22, %c0_23] : memref<16x32xf32, #tpu.memory_space<vmem>>, vector<16x32xf32>
    tpu.vector_store %arg8[%c0_22, %c0_23], %34 {strides = array<i32>} : memref<16x32xf32, #tpu.memory_space<vmem>>, vector<16x32xf32>,
    %36 = vector.extract_strided_slice %5 {offsets = [0, 1, 0, 0], sizes = [4, 1, 5, 16], strides = [1, 1, 1, 1]} : vector<5x2x5x16xbf16> to vector<4x1x5x16xbf16>
    %37 = vector.shape_cast %36 : vector<4x1x5x16xbf16> to vector<4x5x16xbf16>
    %38 = vector.extract_strided_slice %9 {offsets = [0, 1, 0, 0], sizes = [4, 1, 5, 16], strides = [1, 1, 1, 1]} : vector<5x2x5x16xbf16> to vector<4x1x5x16xbf16>
    %39 = vector.shape_cast %38 : vector<4x1x5x16xbf16> to vector<4x5x16xbf16>
    %40 = vector.extract_strided_slice %37 {offsets = [0, 0, 0], sizes = [4, 4, 16], strides = [1, 1, 1]} : vector<4x5x16xbf16> to vector<4x4x16xbf16>
    %41 = vector.extract_strided_slice %39 {offsets = [0, 0, 0], sizes = [4, 4, 16], strides = [1, 1, 1]} : vector<4x5x16xbf16> to vector<4x4x16xbf16>
    %42 = vector.extract_strided_slice %37 {offsets = [0, 1, 0], sizes = [4, 4, 16], strides = [1, 1, 1]} : vector<4x5x16xbf16> to vector<4x4x16xbf16>
    %43 = vector.shape_cast %40 : vector<4x4x16xbf16> to vector<16x16xbf16>
    %c3 = arith.constant 3 : index
    %c0_24 = arith.constant 0 : index
    %c0_25 = arith.constant 0 : index
    %44 = vector.load %arg4[%c3, %c0_24, %c0_25] : memref<9x16x32xbf16, #tpu.memory_space<vmem>>, vector<1x16x32xbf16>
    %45 = vector.shape_cast %44 : vector<1x16x32xbf16> to vector<16x32xbf16>
    %cst_26 = arith.constant dense<0.000000e+00> : vector<16x32xf32>
    %46 = tpu.matmul %43, %45, %cst_26 {dimension_numbers = #tpu.dot_dimension_numbers<[1], [0], [0], [1], [0, 0, 1, 1], [], []>} : vector<16x16xbf16>, vector<16x32xbf16>, vector<16x32xf32> -> vector<16x32xf32>
    %c0_27 = arith.constant 0 : index
    %c0_28 = arith.constant 0 : index
    %47 = vector.load %arg8[%c0_27, %c0_28] : memref<16x32xf32, #tpu.memory_space<vmem>>, vector<16x32xf32>
    %48 = arith.addf %47, %46 : vector<16x32xf32>
    %c0_29 = arith.constant 0 : index
    %c0_30 = arith.constant 0 : index
    %49 = vector.load %arg8[%c0_29, %c0_30] : memref<16x32xf32, #tpu.memory_space<vmem>>, vector<16x32xf32>
    tpu.vector_store %arg8[%c0_29, %c0_30], %48 {strides = array<i32>} : memref<16x32xf32, #tpu.memory_space<vmem>>, vector<16x32xf32>,
    %50 = vector.shape_cast %41 : vector<4x4x16xbf16> to vector<16x16xbf16>
    %c4 = arith.constant 4 : index
    %c0_31 = arith.constant 0 : index
    %c0_32 = arith.constant 0 : index
    %51 = vector.load %arg4[%c4, %c0_31, %c0_32] : memref<9x16x32xbf16, #tpu.memory_space<vmem>>, vector<1x16x32xbf16>
    %52 = vector.shape_cast %51 : vector<1x16x32xbf16> to vector<16x32xbf16>
    %cst_33 = arith.constant dense<0.000000e+00> : vector<16x32xf32>
    %53 = tpu.matmul %50, %52, %cst_33 {dimension_numbers = #tpu.dot_dimension_numbers<[1], [0], [0], [1], [0, 0, 1, 1], [], []>} : vector<16x16xbf16>, vector<16x32xbf16>, vector<16x32xf32> -> vector<16x32xf32>
    %c0_34 = arith.constant 0 : index
    %c0_35 = arith.constant 0 : index
    %54 = vector.load %arg8[%c0_34, %c0_35] : memref<16x32xf32, #tpu.memory_space<vmem>>, vector<16x32xf32>
    %55 = arith.addf %54, %53 : vector<16x32xf32>
    %c0_36 = arith.constant 0 : index
    %c0_37 = arith.constant 0 : index
    %56 = vector.load %arg8[%c0_36, %c0_37] : memref<16x32xf32, #tpu.memory_space<vmem>>, vector<16x32xf32>
    tpu.vector_store %arg8[%c0_36, %c0_37], %55 {strides = array<i32>} : memref<16x32xf32, #tpu.memory_space<vmem>>, vector<16x32xf32>,
    %57 = vector.shape_cast %42 : vector<4x4x16xbf16> to vector<16x16xbf16>
    %c5 = arith.constant 5 : index
    %c0_38 = arith.constant 0 : index
    %c0_39 = arith.constant 0 : index
    %58 = vector.load %arg4[%c5, %c0_38, %c0_39] : memref<9x16x32xbf16, #tpu.memory_space<vmem>>, vector<1x16x32xbf16>
    %59 = vector.shape_cast %58 : vector<1x16x32xbf16> to vector<16x32xbf16>
    %cst_40 = arith.constant dense<0.000000e+00> : vector<16x32xf32>
    %60 = tpu.matmul %57, %59, %cst_40 {dimension_numbers = #tpu.dot_dimension_numbers<[1], [0], [0], [1], [0, 0, 1, 1], [], []>} : vector<16x16xbf16>, vector<16x32xbf16>, vector<16x32xf32> -> vector<16x32xf32>
    %c0_41 = arith.constant 0 : index
    %c0_42 = arith.constant 0 : index
    %61 = vector.load %arg8[%c0_41, %c0_42] : memref<16x32xf32, #tpu.memory_space<vmem>>, vector<16x32xf32>
    %62 = arith.addf %61, %60 : vector<16x32xf32>
    %c0_43 = arith.constant 0 : index
    %c0_44 = arith.constant 0 : index
    %63 = vector.load %arg8[%c0_43, %c0_44] : memref<16x32xf32, #tpu.memory_space<vmem>>, vector<16x32xf32>
    tpu.vector_store %arg8[%c0_43, %c0_44], %62 {strides = array<i32>} : memref<16x32xf32, #tpu.memory_space<vmem>>, vector<16x32xf32>,
    %64 = vector.extract_strided_slice %5 {offsets = [1, 0, 0, 0], sizes = [4, 1, 5, 16], strides = [1, 1, 1, 1]} : vector<5x2x5x16xbf16> to vector<4x1x5x16xbf16>
    %65 = vector.shape_cast %64 : vector<4x1x5x16xbf16> to vector<4x5x16xbf16>
    %66 = vector.extract_strided_slice %9 {offsets = [1, 0, 0, 0], sizes = [4, 1, 5, 16], strides = [1, 1, 1, 1]} : vector<5x2x5x16xbf16> to vector<4x1x5x16xbf16>
    %67 = vector.shape_cast %66 : vector<4x1x5x16xbf16> to vector<4x5x16xbf16>
    %68 = vector.extract_strided_slice %65 {offsets = [0, 0, 0], sizes = [4, 4, 16], strides = [1, 1, 1]} : vector<4x5x16xbf16> to vector<4x4x16xbf16>
    %69 = vector.extract_strided_slice %67 {offsets = [0, 0, 0], sizes = [4, 4, 16], strides = [1, 1, 1]} : vector<4x5x16xbf16> to vector<4x4x16xbf16>
    %70 = vector.extract_strided_slice %65 {offsets = [0, 1, 0], sizes = [4, 4, 16], strides = [1, 1, 1]} : vector<4x5x16xbf16> to vector<4x4x16xbf16>
    %71 = vector.shape_cast %68 : vector<4x4x16xbf16> to vector<16x16xbf16>
    %c6 = arith.constant 6 : index
    %c0_45 = arith.constant 0 : index
    %c0_46 = arith.constant 0 : index
    %72 = vector.load %arg4[%c6, %c0_45, %c0_46] : memref<9x16x32xbf16, #tpu.memory_space<vmem>>, vector<1x16x32xbf16>
    %73 = vector.shape_cast %72 : vector<1x16x32xbf16> to vector<16x32xbf16>
    %cst_47 = arith.constant dense<0.000000e+00> : vector<16x32xf32>
    %74 = tpu.matmul %71, %73, %cst_47 {dimension_numbers = #tpu.dot_dimension_numbers<[1], [0], [0], [1], [0, 0, 1, 1], [], []>} : vector<16x16xbf16>, vector<16x32xbf16>, vector<16x32xf32> -> vector<16x32xf32>
    %c0_48 = arith.constant 0 : index
    %c0_49 = arith.constant 0 : index
    %75 = vector.load %arg8[%c0_48, %c0_49] : memref<16x32xf32, #tpu.memory_space<vmem>>, vector<16x32xf32>
    %76 = arith.addf %75, %74 : vector<16x32xf32>
    %c0_50 = arith.constant 0 : index
    %c0_51 = arith.constant 0 : index
    %77 = vector.load %arg8[%c0_50, %c0_51] : memref<16x32xf32, #tpu.memory_space<vmem>>, vector<16x32xf32>
    tpu.vector_store %arg8[%c0_50, %c0_51], %76 {strides = array<i32>} : memref<16x32xf32, #tpu.memory_space<vmem>>, vector<16x32xf32>,
    %78 = vector.shape_cast %69 : vector<4x4x16xbf16> to vector<16x16xbf16>
    %c7 = arith.constant 7 : index
    %c0_52 = arith.constant 0 : index
    %c0_53 = arith.constant 0 : index
    %79 = vector.load %arg4[%c7, %c0_52, %c0_53] : memref<9x16x32xbf16, #tpu.memory_space<vmem>>, vector<1x16x32xbf16>
    %80 = vector.shape_cast %79 : vector<1x16x32xbf16> to vector<16x32xbf16>
    %cst_54 = arith.constant dense<0.000000e+00> : vector<16x32xf32>
    %81 = tpu.matmul %78, %80, %cst_54 {dimension_numbers = #tpu.dot_dimension_numbers<[1], [0], [0], [1], [0, 0, 1, 1], [], []>} : vector<16x16xbf16>, vector<16x32xbf16>, vector<16x32xf32> -> vector<16x32xf32>
    %c0_55 = arith.constant 0 : index
    %c0_56 = arith.constant 0 : index
    %82 = vector.load %arg8[%c0_55, %c0_56] : memref<16x32xf32, #tpu.memory_space<vmem>>, vector<16x32xf32>
    %83 = arith.addf %82, %81 : vector<16x32xf32>
    %c0_57 = arith.constant 0 : index
    %c0_58 = arith.constant 0 : index
    %84 = vector.load %arg8[%c0_57, %c0_58] : memref<16x32xf32, #tpu.memory_space<vmem>>, vector<16x32xf32>
    tpu.vector_store %arg8[%c0_57, %c0_58], %83 {strides = array<i32>} : memref<16x32xf32, #tpu.memory_space<vmem>>, vector<16x32xf32>,
    %85 = vector.shape_cast %70 : vector<4x4x16xbf16> to vector<16x16xbf16>
    %c8 = arith.constant 8 : index
    %c0_59 = arith.constant 0 : index
    %c0_60 = arith.constant 0 : index
    %86 = vector.load %arg4[%c8, %c0_59, %c0_60] : memref<9x16x32xbf16, #tpu.memory_space<vmem>>, vector<1x16x32xbf16>
    %87 = vector.shape_cast %86 : vector<1x16x32xbf16> to vector<16x32xbf16>
    %cst_61 = arith.constant dense<0.000000e+00> : vector<16x32xf32>
    %88 = tpu.matmul %85, %87, %cst_61 {dimension_numbers = #tpu.dot_dimension_numbers<[1], [0], [0], [1], [0, 0, 1, 1], [], []>} : vector<16x16xbf16>, vector<16x32xbf16>, vector<16x32xf32> -> vector<16x32xf32>
    %c0_62 = arith.constant 0 : index
    %c0_63 = arith.constant 0 : index
    %89 = vector.load %arg8[%c0_62, %c0_63] : memref<16x32xf32, #tpu.memory_space<vmem>>, vector<16x32xf32>
    %90 = arith.addf %89, %88 : vector<16x32xf32>
    %c0_64 = arith.constant 0 : index
    %c0_65 = arith.constant 0 : index
    %91 = vector.load %arg8[%c0_64, %c0_65] : memref<16x32xf32, #tpu.memory_space<vmem>>, vector<16x32xf32>
    tpu.vector_store %arg8[%c0_64, %c0_65], %90 {strides = array<i32>} : memref<16x32xf32, #tpu.memory_space<vmem>>, vector<16x32xf32>,
    %c0_66 = arith.constant 0 : index
    %c0_67 = arith.constant 0 : index
    %92 = vector.load %arg8[%c0_66, %c0_67] : memref<16x32xf32, #tpu.memory_space<vmem>>, vector<16x32xf32>
    %c0_68 = arith.constant 0 : index
    %c0_69 = arith.constant 0 : index
    %93 = vector.load %arg5[%c0_68, %c0_69] : memref<1x32xf32, #tpu.memory_space<vmem>>, vector<1x32xf32>
    %94 = vector.broadcast %93 : vector<1x32xf32> to vector<16x32xf32>
    %95 = arith.mulf %92, %94 : vector<16x32xf32>
    %c0_70 = arith.constant 0 : index
    %c0_71 = arith.constant 0 : index
    %96 = vector.load %arg6[%c0_70, %c0_71] : memref<1x32xf32, #tpu.memory_space<vmem>>, vector<1x32xf32>
    %97 = vector.broadcast %96 : vector<1x32xf32> to vector<16x32xf32>
    %98 = arith.addf %95, %97 : vector<16x32xf32>
    %99 = vector.shape_cast %98 : vector<16x32xf32> to vector<1x4x4x32xf32>
    %c0_72 = arith.constant 0 : index
    %c0_73 = arith.constant 0 : index
    %c0_74 = arith.constant 0 : index
    %c0_75 = arith.constant 0 : index
    %100 = vector.load %arg7[%c0_72, %c0_73, %c0_74, %c0_75] : memref<1x4x4x32xf32, #tpu.memory_space<vmem>>, vector<1x4x4x32xf32>
    tpu.vector_store %arg7[%c0_72, %c0_73, %c0_74, %c0_75], %99 {strides = array<i32>} : memref<1x4x4x32xf32, #tpu.memory_space<vmem>>, vector<1x4x4x32xf32>,
    return
  }
  func.func @transform_0(%arg0: i32, %arg1: i32) -> (i32, i32, i32, i32) {
    %c0_i32 = arith.constant 0 : i32
    %c0_i32_0 = arith.constant 0 : i32
    %c0_i32_1 = arith.constant 0 : i32
    %c0_i32_2 = arith.constant 0 : i32
    return %arg0, %c0_i32, %c0_i32_0, %c0_i32_1 : i32, i32, i32, i32
  }
  func.func @transform_1(%arg0: i32, %arg1: i32) -> (i32, i32, i32, i32) {
    %c0_i32 = arith.constant 0 : i32
    %c0_i32_0 = arith.constant 0 : i32
    %c0_i32_1 = arith.constant 0 : i32
    %c0_i32_2 = arith.constant 0 : i32
    return %arg0, %c0_i32, %c0_i32_0, %c0_i32_1 : i32, i32, i32, i32
  }
  func.func @transform_2(%arg0: i32, %arg1: i32) -> (i32, i32, i32) {
    %c0_i32 = arith.constant 0 : i32
    %c0_i32_0 = arith.constant 0 : i32
    %c0_i32_1 = arith.constant 0 : i32
    %c0_i32_2 = arith.constant 0 : i32
    return %c0_i32, %c0_i32_0, %c0_i32_1 : i32, i32, i32
  }
  func.func @transform_3(%arg0: i32, %arg1: i32) -> (i32, i32) {
    %c0_i32 = arith.constant 0 : i32
    %c0_i32_0 = arith.constant 0 : i32
    %c0_i32_1 = arith.constant 0 : i32
    return %c0_i32, %c0_i32_0 : i32, i32
  }
  func.func @transform_4(%arg0: i32, %arg1: i32) -> (i32, i32) {
    %c0_i32 = arith.constant 0 : i32
    %c0_i32_0 = arith.constant 0 : i32
    %c0_i32_1 = arith.constant 0 : i32
    return %c0_i32, %c0_i32_0 : i32, i32
  }
  func.func @transform_5(%arg0: i32, %arg1: i32) -> (i32, i32, i32, i32) {
    %c0_i32 = arith.constant 0 : i32
    %c0_i32_0 = arith.constant 0 : i32
    %c0_i32_1 = arith.constant 0 : i32
    return %arg0, %arg1, %c0_i32, %c0_i32_0 : i32, i32, i32, i32
  }
}

</mosaic_0001>

<llo_original>
// kernel: conv_patch_embed_forward.3
$region0: #{conv_patch_embed_forward.3}
  #allocation0 [shape = 'u32[]', space=smem, size = 0x4, offset = 0x4, fixed_abs, tag = 'smem constant byte address 0x4 - core index']
  #allocation1 [shape = 'u32[72,128]{1,0:T(1,128)}', space=vmem, size = 0x9000, scoped, tag = 'internal scratch']
  #allocation2 [shape = 'f32[16,32]{1,0:T(8,128)}', space=vmem, size = 0x2000, scoped, tag = 'scratch operand']
  %s0 = inlined_call_operand.vmem [shape: bf16[2,10,5,16], index: 0, kind: input, shape index: {}]
  %s1 = inlined_call_operand.vmem [shape: bf16[2,10,5,16], index: 1, kind: input, shape index: {}]
  %s2 = inlined_call_operand.vmem [shape: bf16[9,16,32], index: 2, kind: input, shape index: {}]
  %s3 = inlined_call_operand.vmem [shape: f32[1,32], index: 3, kind: input, shape index: {}]
  %s4 = inlined_call_operand.vmem [shape: f32[1,32], index: 4, kind: input, shape index: {}]
  %s5 = inlined_call_operand.hbm [shape: f32[2,4,4,32], index: 5, kind: output, shape index: {}]
  %s6 = sld [smem:[#allocation0]]
  $region53: #{conv_patch_embed_forward.3} parent=0
    _
  %s8 = ssub.s32 1, %s6
  %s9 = scalar_select 0, %s8, %s6
  $region1: #{conv_patch_embed_forward.3} parent=0
    #allocation3 [shape = 'u8[16384]{0}', space=vmem, size = 0x4000, scoped, tag = 'output window, operand 0']
    #allocation4 [shape = 's32[2]{0}', space=sflag, size = 0x8, scoped, tag = 'scoped memory for conv_patch_embed_forward.3']
    %10 = vsyncpa [#allocation4], 0
    %s11 = scalar_lea.sflag [#allocation4], 1
    %12 = vsyncpa %s11, 0
    loop: start=0, step=1, limit=4
    $region2: #{conv_patch_embed_forward.3} parent=1 // loop_pre_header
      _
    $region3: #{conv_patch_embed_forward.3} parent=1 // loop_header
      %s14 = sphi 0, %s18
      %p15 = scmp.ge.s32.totalorder %s14, 4
      %s21 = sphi 0, %s33
      %s22 = sphi 0, %s29
      %s23 = sphi 0, %s21
      %s24 = sphi 0, %s22
      %s25 = sphi 0, %s23
      %s26 = sphi 0, %s24
      %s36 = sphi 0, %s38
      %s39 = sphi 0, %s36
      %s40 = sphi 0, %s39
      %s56 = sphi 0, %s40
      %s62 = sphi 0, %s64
      %s65 = sphi 0, %s62
      %s66 = sphi 0, %s65
      %s82 = sphi 0, %s66
      %s86 = sphi 0, %s86
      %s88 = sphi 0, %s86
      %s89 = sphi 0, %s88
      %s103 = sphi 0, %s89
      %s107 = sphi 0, %s107
      %s109 = sphi 0, %s107
      %s110 = sphi 0, %s109
      %s124 = sphi 0, %s110
      %s128 = sphi 0, %s128
      %s130 = sphi 0, %s128
      %s131 = sphi 0, %s130
      %s145 = sphi 0, %s131
      %s153 = sphi 0, %s155
      %s156 = sphi 0, %s153
      %s157 = sphi 0, %s156
      %s173 = sphi 0, %s157
    $region4: #{conv_patch_embed_forward.3} parent=1 // loop_header_branch
      %17 = sbr.rel (%p15) target = $region8
    $region5: #{conv_patch_embed_forward.3} parent=1 // loop_body
      %s19 = ssub.s32 %s14, 1
      %s20 = ssub.s32 %s14, 2
      %s27 = sadd.s32 1, %s22
      %p28 = scmp.ge.s32.totalorder %s27, 1
      %s29 = scalar_select %p28, 0, %s27
      %s30 = sadd.s32 1, %s21
      %s31 = scalar_select %p28, %s30, %s21
      %p32 = scmp.ge.s32.totalorder %s31, 2
      %s33 = scalar_select %p32, 0, %s31
      %s34 = ssub.s32 %s21, %s33
      %p35 = scmp.eq.s32.totalorder %s34, 0
      %s37 = sadd.s32 %s36, 1
      %s38 = scalar_select %p35, %s36, %s37
      %p41 = pneg %p35
      %p42 = scmp.eq.s32.totalorder %s14, 1
      %p43 = por %p41, %p42
      %p44 = scmp.ne.s32.totalorder %s36, %s39
      %p45 = scmp.eq.s32.totalorder %s14, 0
      %p46 = por %p44, %p45
      %p47 = scmp.ne.s32.totalorder %s36, %s39
      %p48 = scmp.eq.s32.totalorder %s19, 1
      %p49 = por %p47, %p48
      %p50 = scmp.ne.s32.totalorder %s39, %s40
      %p51 = scmp.eq.s32.totalorder %s19, 0
      %p52 = por %p50, %p51
      %p53 = scmp.ne.s32.totalorder %s39, %s40
      %p54 = scmp.eq.s32.totalorder %s20, 1
      %p55 = por %p53, %p54
      %p57 = scmp.ne.s32.totalorder %s40, %s56
      %p58 = scmp.eq.s32.totalorder %s20, 0
      %p59 = por %p57, %p58
      %s60 = ssub.s32 %s21, %s33
      %p61 = scmp.eq.s32.totalorder %s60, 0
      %s63 = sadd.s32 %s62, 1
      %s64 = scalar_select %p61, %s62, %s63
      %p67 = pneg %p61
      %p68 = scmp.eq.s32.totalorder %s14, 1
      %p69 = por %p67, %p68
      %p70 = scmp.ne.s32.totalorder %s62, %s65
      %p71 = scmp.eq.s32.totalorder %s14, 0
      %p72 = por %p70, %p71
      %p73 = scmp.ne.s32.totalorder %s62, %s65
      %p74 = scmp.eq.s32.totalorder %s19, 1
      %p75 = por %p73, %p74
      %p76 = scmp.ne.s32.totalorder %s65, %s66
      %p77 = scmp.eq.s32.totalorder %s19, 0
      %p78 = por %p76, %p77
      %p79 = scmp.ne.s32.totalorder %s65, %s66
      %p80 = scmp.eq.s32.totalorder %s20, 1
      %p81 = por %p79, %p80
      %p83 = scmp.ne.s32.totalorder %s66, %s82
      %p84 = scmp.eq.s32.totalorder %s20, 0
      %p85 = por %p83, %p84
      %s87 = sadd.s32 %s86, 1
      %p90 = scmp.eq.s32.totalorder %s14, 1
      %p91 = scmp.ne.s32.totalorder %s86, %s88
      %p92 = scmp.eq.s32.totalorder %s14, 0
      %p93 = por %p91, %p92
      %p94 = scmp.ne.s32.totalorder %s86, %s88
      %p95 = scmp.eq.s32.totalorder %s19, 1
      %p96 = por %p94, %p95
      %p97 = scmp.ne.s32.totalorder %s88, %s89
      %p98 = scmp.eq.s32.totalorder %s19, 0
      %p99 = por %p97, %p98
      %p100 = scmp.ne.s32.totalorder %s88, %s89
      %p101 = scmp.eq.s32.totalorder %s20, 1
      %p102 = por %p100, %p101
      %p104 = scmp.ne.s32.totalorder %s89, %s103
      %p105 = scmp.eq.s32.totalorder %s20, 0
      %p106 = por %p104, %p105
      %s108 = sadd.s32 %s107, 1
      %p111 = scmp.eq.s32.totalorder %s14, 1
      %p112 = scmp.ne.s32.totalorder %s107, %s109
      %p113 = scmp.eq.s32.totalorder %s14, 0
      %p114 = por %p112, %p113
      %p115 = scmp.ne.s32.totalorder %s107, %s109
      %p116 = scmp.eq.s32.totalorder %s19, 1
      %p117 = por %p115, %p116
      %p118 = scmp.ne.s32.totalorder %s109, %s110
      %p119 = scmp.eq.s32.totalorder %s19, 0
      %p120 = por %p118, %p119
      %p121 = scmp.ne.s32.totalorder %s109, %s110
      %p122 = scmp.eq.s32.totalorder %s20, 1
      %p123 = por %p121, %p122
      %p125 = scmp.ne.s32.totalorder %s110, %s124
      %p126 = scmp.eq.s32.totalorder %s20, 0
      %p127 = por %p125, %p126
      %s129 = sadd.s32 %s128, 1
      %p132 = scmp.eq.s32.totalorder %s14, 1
      %p133 = scmp.ne.s32.totalorder %s128, %s130
      %p134 = scmp.eq.s32.totalorder %s14, 0
      %p135 = por %p133, %p134
      %p136 = scmp.ne.s32.totalorder %s128, %s130
      %p137 = scmp.eq.s32.totalorder %s19, 1
      %p138 = por %p136, %p137
      %p139 = scmp.ne.s32.totalorder %s130, %s131
      %p140 = scmp.eq.s32.totalorder %s19, 0
      %p141 = por %p139, %p140
      %p142 = scmp.ne.s32.totalorder %s130, %s131
      %p143 = scmp.eq.s32.totalorder %s20, 1
      %p144 = por %p142, %p143
      %p146 = scmp.ne.s32.totalorder %s131, %s145
      %p147 = scmp.eq.s32.totalorder %s20, 0
      %p148 = por %p146, %p147
      %s149 = ssub.s32 %s21, %s33
      %s150 = ssub.s32 %s22, %s29
      %s151 = sor.u32 %s149, %s150
      %p152 = scmp.eq.s32.totalorder %s151, 0
      %s154 = sadd.s32 %s153, 1
      %s155 = scalar_select %p152, %s153, %s154
      %p158 = pneg %p152
      %p159 = scmp.eq.s32.totalorder %s14, 1
      %p160 = por %p158, %p159
      %p161 = scmp.ne.s32.totalorder %s153, %s156
      %p162 = scmp.eq.s32.totalorder %s14, 0
      %p163 = por %p161, %p162
      %p164 = scmp.ne.s32.totalorder %s153, %s156
      %p165 = scmp.eq.s32.totalorder %s19, 1
      %p166 = por %p164, %p165
      %p167 = scmp.ne.s32.totalorder %s156, %s157
      %p168 = scmp.eq.s32.totalorder %s19, 0
      %p169 = por %p167, %p168
      %p170 = scmp.ne.s32.totalorder %s156, %s157
      %p171 = scmp.eq.s32.totalorder %s20, 1
      %p172 = por %p170, %p171
      %p174 = scmp.ne.s32.totalorder %s157, %s173
      %p175 = scmp.eq.s32.totalorder %s20, 0
      %p176 = por %p174, %p175
      %p177 = scmp.le.s32.totalorder 1, %s14
      %p178 = scmp.lt.s32.totalorder %s14, 3
      %p179 = pnand %p177, %p178
      %p180 = pneg %p179
      // Predicated region
      $region9: #{conv_patch_embed_forward.3} parent=5 // pred_check
        _
      $region10: #{conv_patch_embed_forward.3} parent=5 // pred_check_branch
        %182 = sbr.rel (%p179) target = $region12
      $region11: #{conv_patch_embed_forward.3} parent=5 // pred_region
        %s183 = ssub.s32 %s14, 1
        // Predicated region
        $region13: #{conv_patch_embed_forward.3} parent=11 // pred_check
          %p184 = pneg %p99
        $region14: #{conv_patch_embed_forward.3} parent=11 // pred_check_branch
          %186 = sbr.rel (%p184) target = $region16
        $region15: #{conv_patch_embed_forward.3} parent=11 // pred_region
          _
        $region16: #{conv_patch_embed_forward.3} parent=11 // pred_fallthru
          _
        // Predicated region
        $region17: #{conv_patch_embed_forward.3} parent=11 // pred_check
          %p187 = pneg %p120
        $region18: #{conv_patch_embed_forward.3} parent=11 // pred_check_branch
          %189 = sbr.rel (%p187) target = $region20
        $region19: #{conv_patch_embed_forward.3} parent=11 // pred_region
          _
        $region20: #{conv_patch_embed_forward.3} parent=11 // pred_fallthru
          _
        // Predicated region
        $region21: #{conv_patch_embed_forward.3} parent=11 // pred_check
          %p190 = pneg %p141
        $region22: #{conv_patch_embed_forward.3} parent=11 // pred_check_branch
          %192 = sbr.rel (%p190) target = $region24
        $region23: #{conv_patch_embed_forward.3} parent=11 // pred_region
          _
        $region24: #{conv_patch_embed_forward.3} parent=11 // pred_fallthru
          _
      $region12: #{conv_patch_embed_forward.3} parent=5 // pred_fallthru
        _
      %p193 = scmp.lt.s32.totalorder %s14, 2
      // Predicated region
      $region25: #{conv_patch_embed_forward.3} parent=5 // pred_check
        %p194 = pneg %p193
      $region26: #{conv_patch_embed_forward.3} parent=5 // pred_check_branch
        %196 = sbr.rel (%p194) target = $region28
      $region27: #{conv_patch_embed_forward.3} parent=5 // pred_region
        // Predicated region
        $region29: #{conv_patch_embed_forward.3} parent=27 // pred_check
          %p197 = pneg %p46
        $region30: #{conv_patch_embed_forward.3} parent=27 // pred_check_branch
          %199 = sbr.rel (%p197) target = $region32
        $region31: #{conv_patch_embed_forward.3} parent=27 // pred_region
          %p200 = scmp.lt.s32.totalorder %s21, 1
          %s201 = scalar_select %p200, %s21, 1
          %s202 = smul.addr %s201, 10
          %s203 = smul.addr %s202, 4
          %s204 = scalar_lea.vmem %s0, %s203
        $region32: #{conv_patch_embed_forward.3} parent=27 // pred_fallthru
          _
        // Predicated region
        $region33: #{conv_patch_embed_forward.3} parent=27 // pred_check
          %p205 = pneg %p72
        $region34: #{conv_patch_embed_forward.3} parent=27 // pred_check_branch
          %207 = sbr.rel (%p205) target = $region36
        $region35: #{conv_patch_embed_forward.3} parent=27 // pred_region
          %p208 = scmp.lt.s32.totalorder %s21, 1
          %s209 = scalar_select %p208, %s21, 1
          %s210 = smul.addr %s209, 10
          %s211 = smul.addr %s210, 4
          %s212 = scalar_lea.vmem %s1, %s211
        $region36: #{conv_patch_embed_forward.3} parent=27 // pred_fallthru
          _
      $region28: #{conv_patch_embed_forward.3} parent=5 // pred_fallthru
        _
      %p213 = scmp.le.s32.totalorder 1, %s14
      %p214 = scmp.lt.s32.totalorder %s14, 3
      %p215 = pnand %p213, %p214
      %p216 = pneg %p215
      // Predicated region
      $region37: #{conv_patch_embed_forward.3} parent=5 // pred_check
        _
      $region38: #{conv_patch_embed_forward.3} parent=5 // pred_check_branch
        %218 = sbr.rel (%p215) target = $region40
      $region39: #{conv_patch_embed_forward.3} parent=5 // pred_region
        %s219 = ssub.s32 %s14, 1
        %p220 = scmp.lt.s32.totalorder %s23, 1
        %s221 = scalar_select %p220, %s23, 1
        %s222 = smul.addr %s221, 10
        %s223 = smul.addr %s222, 4
        %s224 = scalar_lea.vmem %s0, %s223
        %p225 = pneg %p52
        %p226 = pneg %p49
        %p227 = scmp.lt.s32.totalorder %s23, 1
        %s228 = scalar_select %p227, %s23, 1
        %s229 = smul.addr %s228, 10
        %s230 = smul.addr %s229, 4
        %s231 = scalar_lea.vmem %s1, %s230
        %p232 = pneg %p78
        %p233 = pneg %p75
        %p234 = pneg %p99
        %p235 = pneg %p96
        %p236 = pneg %p120
        %p237 = pneg %p117
        %p238 = pneg %p141
        %p239 = pneg %p138
        %p240 = pneg %p169
        %p241 = pneg %p166
        %s242 = sand.u32 %s156, 1
        %s243 = scalar_lea.sflag [#allocation4], %s242
        %s244 = sand.u32 %s156, 1
        %s245 = smul.addr %s244, 16
        %s246 = scalar_lea.vmem [#allocation3], %s245
        %p247 = scmp.lt.s32.totalorder %s23, 1
        %s248 = scalar_select %p247, %s23, 1
        %s249 = smul.addr %s248, 10
        %s250 = smul.addr %s249, 4
        %s251 = scalar_lea.vmem %s0, %s250
        %p252 = scmp.lt.s32.totalorder %s23, 1
        %s253 = scalar_select %p252, %s23, 1
        %s254 = smul.addr %s253, 10
        %s255 = smul.addr %s254, 4
        %s256 = scalar_lea.vmem %s1, %s255
        %s257 = smul.u32 4, %s24
        %s259 = smul.u32 %s24, 8
        %s260 = smul.addr %s259, 4
        %s261 = scalar_lea.vmem %s251, %s260
        %v262 = vld [vmem:[%s261] sm:$0x7]
        %v263 = vld [vmem:[%s261 + $0x4] sm:$0x7]
        %v264 = vld [vmem:[%s261 + $0x8] sm:$0x7]
        %v265 = vld [vmem:[%s261 + $0xc] sm:$0x7]
        %v266 = vld [vmem:[%s261 + $0x10] sm:$0x7]
        %v267 = vld [vmem:[%s261 + $0x14] sm:$0x7]
        %v268 = vld [vmem:[%s261 + $0x18] sm:$0x7]
        %v269 = vld [vmem:[%s261 + $0x1c] sm:$0x7]
        %v270 = vld [vmem:[%s261 + $0x20] sm:$0x7]
        %s271 = smul.addr %s259, 4
        %s272 = scalar_lea.vmem %s256, %s271
        %v273 = vld [vmem:[%s272] sm:$0x7]
        %v274 = vld [vmem:[%s272 + $0x4] sm:$0x7]
        %v275 = vld [vmem:[%s272 + $0x8] sm:$0x7]
        %v276 = vld [vmem:[%s272 + $0xc] sm:$0x7]
        %v277 = vld [vmem:[%s272 + $0x10] sm:$0x7]
        %v278 = vld [vmem:[%s272 + $0x14] sm:$0x7]
        %v279 = vld [vmem:[%s272 + $0x18] sm:$0x7]
        %v280 = vld [vmem:[%s272 + $0x1c] sm:$0x7]
        %v281 = vld [vmem:[%s272 + $0x20] sm:$0x7]
        %v282 = vld [vmem:[%s2] sm:$0xf]
        %v283 = vld [vmem:[%s2 + $0x4] sm:$0xf]
        %285 = vst [vmem:[#allocation1] ss:$4 sm:$0xff] %v262
        %s287 = scalar_lea.vmem [#allocation1], 1
        %288 = vst [vmem:[%s287] ss:$4 sm:$0xff] %v264
        %s290 = scalar_lea.vmem [#allocation1], 2
        %291 = vst [vmem:[%s290] ss:$4 sm:$0xff] %v266
        %s293 = scalar_lea.vmem [#allocation1], 3
        %294 = vst [vmem:[%s293] ss:$4 sm:$0xff] %v268
        %v295 = vld.sshfl [vmem:[#allocation1] sm:$0xff pattern:$0x73625140]
        %v298 = vunpack.c.l.b16 %v282
        %v299 = vunpack.c.l.b16 %v283
        %v300 = vpack.c.b16 %v299, %v298
        %vm302 = vcmask 130048
        %v303 = vsel %vm302, %v295, 0
        %305 = vmatpush.bf16.msra.mxu0 0
        %306 = vmatpush.bf16.msra.mxu0 0
        %307 = vmatpush.bf16.msra.mxu0 0
        %308 = vmatpush.bf16.msra.mxu0 0
        %309 = vmatpush.bf16.msra.mxu0 0
        %310 = vmatpush.bf16.msra.mxu0 0
        %311 = vmatpush.bf16.msra.mxu0 0
        %312 = vmatpush.bf16.msra.mxu0 %v300
        %313 = vmatmul.bf16.gmra.mxu0 %v303
        %v314 = vpop.f32.mrf.mxu0
        %v315 = vadd.f32 0.0, %v314
        %v316 = vpop.f32.mrf.mxu0
        %v317 = vadd.f32 0.0, %v316
        %318 = vdwg.mxu0
        %vm319 = vcmask 261120
        %320 = vst.msk [vmem:[#allocation2] sm:$0xff] %vm319, %v315
        %321 = vst.msk [vmem:[#allocation2 + $0x8] sm:$0xff] %vm319, %v317
        %s322 = scalar_lea.vmem %s2, 8
        %v323 = vld [vmem:[%s322] sm:$0xf]
        %v324 = vld [vmem:[%s322 + $0x4] sm:$0xf]
        %326 = vst [vmem:[#allocation1] ss:$4 sm:$0xff] %v273
        %s328 = scalar_lea.vmem [#allocation1], 1
        %329 = vst [vmem:[%s328] ss:$4 sm:$0xff] %v275
        %s331 = scalar_lea.vmem [#allocation1], 2
        %332 = vst [vmem:[%s331] ss:$4 sm:$0xff] %v277
        %s334 = scalar_lea.vmem [#allocation1], 3
        %335 = vst [vmem:[%s334] ss:$4 sm:$0xff] %v279
        %v336 = vld.sshfl [vmem:[#allocation1] sm:$0xff pattern:$0x73625140]
        %v339 = vunpack.c.l.b16 %v323
        %v340 = vunpack.c.l.b16 %v324
        %v341 = vpack.c.b16 %v340, %v339
        %v343 = vsel %vm302, %v336, 0
        %345 = vmatpush.bf16.msra.mxu0 0
        %346 = vmatpush.bf16.msra.mxu0 0
        %347 = vmatpush.bf16.msra.mxu0 0
        %348 = vmatpush.bf16.msra.mxu0 0
        %349 = vmatpush.bf16.msra.mxu0 0
        %350 = vmatpush.bf16.msra.mxu0 0
        %351 = vmatpush.bf16.msra.mxu0 0
        %352 = vmatpush.bf16.msra.mxu0 %v341
        %353 = vmatmul.bf16.gmra.mxu0 %v343
        %v354 = vpop.f32.mrf.mxu0
        %v355 = vadd.f32 0.0, %v354
        %v356 = vpop.f32.mrf.mxu0
        %v357 = vadd.f32 0.0, %v356
        %358 = vdwg.mxu0
        %v359 = vld [vmem:[#allocation2] sm:$0xff]
        %v360 = vld [vmem:[#allocation2 + $0x8] sm:$0xff]
        %v361 = vadd.f32 %v359, %v355
        %v362 = vadd.f32 %v360, %v357
        %363 = vst.msk [vmem:[#allocation2] sm:$0xff] %vm319, %v361
        %364 = vst.msk [vmem:[#allocation2 + $0x8] sm:$0xff] %vm319, %v362
        %v369 = vrot.slane %v262, 2
        %v370 = vrot.slane %v264, 2
        %v371 = vrot.slane %v266, 2
        %v372 = vrot.slane %v268, 2
        %vm373 = vcmask 1041408
        %v375 = vsel %vm373, %v262, %v369
        %vm376 = vcmask 1043458
        %v377 = vsel %vm376, %v262, %v369
        %v379 = vrot.slane %v377, 2
        %v381 = vsel %vm373, %v264, %v370
        %v382 = vsel %vm376, %v264, %v370
        %v384 = vrot.slane %v382, 2
        %v386 = vsel %vm373, %v266, %v371
        %v387 = vsel %vm376, %v266, %v371
        %v389 = vrot.slane %v387, 2
        %v391 = vsel %vm373, %v268, %v372
        %v392 = vsel %vm376, %v268, %v372
        %v394 = vrot.slane %v392, 2
        %vm395 = vsmask.f32 1280
        %vm396 = vsmask.f32 3336
        %vm397 = vmor %vm395, %vm396
        %vm398 = vsmask.f32 5392
        %vm399 = vmor %vm397, %vm398
        %vm400 = vsmask.f32 7448
        %vm401 = vmor %vm399, %vm400
        %v402 = vshrl.u32 %v375, 16
        %v404 = vrot.slane %v402, 6
        %v405 = vshll.u32 %v375, 16
        %v407 = vrot.slane %v405, 7
        %v408 = vor.u32 %v404, %v407
        %v409 = vrot.slane %v408, 2
        %v411 = vshll.u32 %v379, 16
        %v413 = vrot.slane %v411, 7
        %v414 = vsel %vm401, %v409, %v413
        %v415 = vshrl.u32 %v381, 16
        %v417 = vrot.slane %v415, 6
        %v418 = vshll.u32 %v381, 16
        %v420 = vrot.slane %v418, 7
        %v421 = vor.u32 %v417, %v420
        %v422 = vrot.slane %v421, 2
        %v424 = vshll.u32 %v384, 16
        %v426 = vrot.slane %v424, 7
        %v427 = vsel %vm401, %v422, %v426
        %v428 = vshrl.u32 %v386, 16
        %v430 = vrot.slane %v428, 6
        %v431 = vshll.u32 %v386, 16
        %v433 = vrot.slane %v431, 7
        %v434 = vor.u32 %v430, %v433
        %v435 = vrot.slane %v434, 2
        %v437 = vshll.u32 %v389, 16
        %v439 = vrot.slane %v437, 7
        %v440 = vsel %vm401, %v435, %v439
        %v441 = vshrl.u32 %v391, 16
        %v443 = vrot.slane %v441, 6
        %v444 = vshll.u32 %v391, 16
        %v446 = vrot.slane %v444, 7
        %v447 = vor.u32 %v443, %v446
        %v448 = vrot.slane %v447, 2
        %v450 = vshll.u32 %v394, 16
        %v452 = vrot.slane %v450, 7
        %v453 = vsel %vm401, %v448, %v452
        %s454 = scalar_lea.vmem %s2, 16
        %v455 = vld [vmem:[%s454] sm:$0xf]
        %v456 = vld [vmem:[%s454 + $0x4] sm:$0xf]
        %458 = vst [vmem:[#allocation1] ss:$4 sm:$0xff] %v414
        %s460 = scalar_lea.vmem [#allocation1], 1
        %461 = vst [vmem:[%s460] ss:$4 sm:$0xff] %v427
        %s463 = scalar_lea.vmem [#allocation1], 2
        %464 = vst [vmem:[%s463] ss:$4 sm:$0xff] %v440
        %s466 = scalar_lea.vmem [#allocation1], 3
        %467 = vst [vmem:[%s466] ss:$4 sm:$0xff] %v453
        %v468 = vld.sshfl [vmem:[#allocation1] sm:$0xff pattern:$0x73625140]
        %v471 = vunpack.c.l.b16 %v455
        %v472 = vunpack.c.l.b16 %v456
        %v473 = vpack.c.b16 %v472, %v471
        %v475 = vsel %vm302, %v468, 0
        %477 = vmatpush.bf16.msra.mxu0 0
        %478 = vmatpush.bf16.msra.mxu0 0
        %479 = vmatpush.bf16.msra.mxu0 0
        %480 = vmatpush.bf16.msra.mxu0 0
        %481 = vmatpush.bf16.msra.mxu0 0
        %482 = vmatpush.bf16.msra.mxu0 0
        %483 = vmatpush.bf16.msra.mxu0 0
        %484 = vmatpush.bf16.msra.mxu0 %v473
        %485 = vmatmul.bf16.gmra.mxu0 %v475
        %v486 = vpop.f32.mrf.mxu0
        %v487 = vadd.f32 0.0, %v486
        %v488 = vpop.f32.mrf.mxu0
        %v489 = vadd.f32 0.0, %v488
        %490 = vdwg.mxu0
        %v491 = vld [vmem:[#allocation2] sm:$0xff]
        %v492 = vld [vmem:[#allocation2 + $0x8] sm:$0xff]
        %v493 = vadd.f32 %v491, %v487
        %v494 = vadd.f32 %v492, %v489
        %495 = vst.msk [vmem:[#allocation2] sm:$0xff] %vm319, %v493
        %496 = vst.msk [vmem:[#allocation2 + $0x8] sm:$0xff] %vm319, %v494
        %s497 = scalar_lea.vmem %s2, 24
        %v498 = vld [vmem:[%s497] sm:$0xf]
        %v499 = vld [vmem:[%s497 + $0x4] sm:$0xf]
        %501 = vst [vmem:[#allocation1] ss:$4 sm:$0xff] %v263
        %s503 = scalar_lea.vmem [#allocation1], 1
        %504 = vst [vmem:[%s503] ss:$4 sm:$0xff] %v265
        %s506 = scalar_lea.vmem [#allocation1], 2
        %507 = vst [vmem:[%s506] ss:$4 sm:$0xff] %v267
        %s509 = scalar_lea.vmem [#allocation1], 3
        %510 = vst [vmem:[%s509] ss:$4 sm:$0xff] %v269
        %v511 = vld.sshfl [vmem:[#allocation1] sm:$0xff pattern:$0x73625140]
        %v514 = vunpack.c.l.b16 %v498
        %v515 = vunpack.c.l.b16 %v499
        %v516 = vpack.c.b16 %v515, %v514
        %v518 = vsel %vm302, %v511, 0
        %520 = vmatpush.bf16.msra.mxu0 0
        %521 = vmatpush.bf16.msra.mxu0 0
        %522 = vmatpush.bf16.msra.mxu0 0
        %523 = vmatpush.bf16.msra.mxu0 0
        %524 = vmatpush.bf16.msra.mxu0 0
        %525 = vmatpush.bf16.msra.mxu0 0
        %526 = vmatpush.bf16.msra.mxu0 0
        %527 = vmatpush.bf16.msra.mxu0 %v516
        %528 = vmatmul.bf16.gmra.mxu0 %v518
        %v529 = vpop.f32.mrf.mxu0
        %v530 = vadd.f32 0.0, %v529
        %v531 = vpop.f32.mrf.mxu0
        %v532 = vadd.f32 0.0, %v531
        %533 = vdwg.mxu0
        %v534 = vld [vmem:[#allocation2] sm:$0xff]
        %v535 = vld [vmem:[#allocation2 + $0x8] sm:$0xff]
        %v536 = vadd.f32 %v534, %v530
        %v537 = vadd.f32 %v535, %v532
        %538 = vst.msk [vmem:[#allocation2] sm:$0xff] %vm319, %v536
        %539 = vst.msk [vmem:[#allocation2 + $0x8] sm:$0xff] %vm319, %v537
        %s540 = scalar_lea.vmem %s2, 32
        %v541 = vld [vmem:[%s540] sm:$0xf]
        %v542 = vld [vmem:[%s540 + $0x4] sm:$0xf]
        %544 = vst [vmem:[#allocation1] ss:$4 sm:$0xff] %v274
        %s546 = scalar_lea.vmem [#allocation1], 1
        %547 = vst [vmem:[%s546] ss:$4 sm:$0xff] %v276
        %s549 = scalar_lea.vmem [#allocation1], 2
        %550 = vst [vmem:[%s549] ss:$4 sm:$0xff] %v278
        %s552 = scalar_lea.vmem [#allocation1], 3
        %553 = vst [vmem:[%s552] ss:$4 sm:$0xff] %v280
        %v554 = vld.sshfl [vmem:[#allocation1] sm:$0xff pattern:$0x73625140]
        %v557 = vunpack.c.l.b16 %v541
        %v558 = vunpack.c.l.b16 %v542
        %v559 = vpack.c.b16 %v558, %v557
        %v561 = vsel %vm302, %v554, 0
        %563 = vmatpush.bf16.msra.mxu0 0
        %564 = vmatpush.bf16.msra.mxu0 0
        %565 = vmatpush.bf16.msra.mxu0 0
        %566 = vmatpush.bf16.msra.mxu0 0
        %567 = vmatpush.bf16.msra.mxu0 0
        %568 = vmatpush.bf16.msra.mxu0 0
        %569 = vmatpush.bf16.msra.mxu0 0
        %570 = vmatpush.bf16.msra.mxu0 %v559
        %571 = vmatmul.bf16.gmra.mxu0 %v561
        %v572 = vpop.f32.mrf.mxu0
        %v573 = vadd.f32 0.0, %v572
        %v574 = vpop.f32.mrf.mxu0
        %v575 = vadd.f32 0.0, %v574
        %576 = vdwg.mxu0
        %v577 = vld [vmem:[#allocation2] sm:$0xff]
        %v578 = vld [vmem:[#allocation2 + $0x8] sm:$0xff]
        %v579 = vadd.f32 %v577, %v573
        %v580 = vadd.f32 %v578, %v575
        %581 = vst.msk [vmem:[#allocation2] sm:$0xff] %vm319, %v579
        %582 = vst.msk [vmem:[#allocation2 + $0x8] sm:$0xff] %vm319, %v580
        %v587 = vrot.slane %v263, 2
        %v588 = vrot.slane %v265, 2
        %v589 = vrot.slane %v267, 2
        %v590 = vrot.slane %v269, 2
        %v592 = vsel %vm373, %v263, %v587
        %v593 = vsel %vm376, %v263, %v587
        %v595 = vrot.slane %v593, 2
        %v597 = vsel %vm373, %v265, %v588
        %v598 = vsel %vm376, %v265, %v588
        %v600 = vrot.slane %v598, 2
        %v602 = vsel %vm373, %v267, %v589
        %v603 = vsel %vm376, %v267, %v589
        %v605 = vrot.slane %v603, 2
        %v607 = vsel %vm373, %v269, %v590
        %v608 = vsel %vm376, %v269, %v590
        %v610 = vrot.slane %v608, 2
        %v611 = vshrl.u32 %v592, 16
        %v613 = vrot.slane %v611, 6
        %v614 = vshll.u32 %v592, 16
        %v616 = vrot.slane %v614, 7
        %v617 = vor.u32 %v613, %v616
        %v618 = vrot.slane %v617, 2
        %v620 = vshll.u32 %v595, 16
        %v622 = vrot.slane %v620, 7
        %v623 = vsel %vm401, %v618, %v622
        %v624 = vshrl.u32 %v597, 16
        %v626 = vrot.slane %v624, 6
        %v627 = vshll.u32 %v597, 16
        %v629 = vrot.slane %v627, 7
        %v630 = vor.u32 %v626, %v629
        %v631 = vrot.slane %v630, 2
        %v633 = vshll.u32 %v600, 16
        %v635 = vrot.slane %v633, 7
        %v636 = vsel %vm401, %v631, %v635
        %v637 = vshrl.u32 %v602, 16
        %v639 = vrot.slane %v637, 6
        %v640 = vshll.u32 %v602, 16
        %v642 = vrot.slane %v640, 7
        %v643 = vor.u32 %v639, %v642
        %v644 = vrot.slane %v643, 2
        %v646 = vshll.u32 %v605, 16
        %v648 = vrot.slane %v646, 7
        %v649 = vsel %vm401, %v644, %v648
        %v650 = vshrl.u32 %v607, 16
        %v652 = vrot.slane %v650, 6
        %v653 = vshll.u32 %v607, 16
        %v655 = vrot.slane %v653, 7
        %v656 = vor.u32 %v652, %v655
        %v657 = vrot.slane %v656, 2
        %v659 = vshll.u32 %v610, 16
        %v661 = vrot.slane %v659, 7
        %v662 = vsel %vm401, %v657, %v661
        %s663 = scalar_lea.vmem %s2, 40
        %v664 = vld [vmem:[%s663] sm:$0xf]
        %v665 = vld [vmem:[%s663 + $0x4] sm:$0xf]
        %667 = vst [vmem:[#allocation1] ss:$4 sm:$0xff] %v623
        %s669 = scalar_lea.vmem [#allocation1], 1
        %670 = vst [vmem:[%s669] ss:$4 sm:$0xff] %v636
        %s672 = scalar_lea.vmem [#allocation1], 2
        %673 = vst [vmem:[%s672] ss:$4 sm:$0xff] %v649
        %s675 = scalar_lea.vmem [#allocation1], 3
        %676 = vst [vmem:[%s675] ss:$4 sm:$0xff] %v662
        %v677 = vld.sshfl [vmem:[#allocation1] sm:$0xff pattern:$0x73625140]
        %v680 = vunpack.c.l.b16 %v664
        %v681 = vunpack.c.l.b16 %v665
        %v682 = vpack.c.b16 %v681, %v680
        %v684 = vsel %vm302, %v677, 0
        %686 = vmatpush.bf16.msra.mxu0 0
        %687 = vmatpush.bf16.msra.mxu0 0
        %688 = vmatpush.bf16.msra.mxu0 0
        %689 = vmatpush.bf16.msra.mxu0 0
        %690 = vmatpush.bf16.msra.mxu0 0
        %691 = vmatpush.bf16.msra.mxu0 0
        %692 = vmatpush.bf16.msra.mxu0 0
        %693 = vmatpush.bf16.msra.mxu0 %v682
        %694 = vmatmul.bf16.gmra.mxu0 %v684
        %v695 = vpop.f32.mrf.mxu0
        %v696 = vadd.f32 0.0, %v695
        %v697 = vpop.f32.mrf.mxu0
        %v698 = vadd.f32 0.0, %v697
        %699 = vdwg.mxu0
        %v700 = vld [vmem:[#allocation2] sm:$0xff]
        %v701 = vld [vmem:[#allocation2 + $0x8] sm:$0xff]
        %v702 = vadd.f32 %v700, %v696
        %v703 = vadd.f32 %v701, %v698
        %704 = vst.msk [vmem:[#allocation2] sm:$0xff] %vm319, %v702
        %705 = vst.msk [vmem:[#allocation2 + $0x8] sm:$0xff] %vm319, %v703
        %s706 = scalar_lea.vmem %s2, 48
        %v707 = vld [vmem:[%s706] sm:$0xf]
        %v708 = vld [vmem:[%s706 + $0x4] sm:$0xf]
        %709 = vst [vmem:[#allocation1] ss:$4 sm:$0xff] %v264
        %s710 = scalar_lea.vmem [#allocation1], 1
        %711 = vst [vmem:[%s710] ss:$4 sm:$0xff] %v266
        %s712 = scalar_lea.vmem [#allocation1], 2
        %713 = vst [vmem:[%s712] ss:$4 sm:$0xff] %v268
        %s715 = scalar_lea.vmem [#allocation1], 3
        %716 = vst [vmem:[%s715] ss:$4 sm:$0xff] %v270
        %v717 = vld.sshfl [vmem:[#allocation1] sm:$0xff pattern:$0x73625140]
        %v720 = vunpack.c.l.b16 %v707
        %v721 = vunpack.c.l.b16 %v708
        %v722 = vpack.c.b16 %v721, %v720
        %v724 = vsel %vm302, %v717, 0
        %726 = vmatpush.bf16.msra.mxu0 0
        %727 = vmatpush.bf16.msra.mxu0 0
        %728 = vmatpush.bf16.msra.mxu0 0
        %729 = vmatpush.bf16.msra.mxu0 0
        %730 = vmatpush.bf16.msra.mxu0 0
        %731 = vmatpush.bf16.msra.mxu0 0
        %732 = vmatpush.bf16.msra.mxu0 0
        %733 = vmatpush.bf16.msra.mxu0 %v722
        %734 = vmatmul.bf16.gmra.mxu0 %v724
        %v735 = vpop.f32.mrf.mxu0
        %v736 = vadd.f32 0.0, %v735
        %v737 = vpop.f32.mrf.mxu0
        %v738 = vadd.f32 0.0, %v737
        %739 = vdwg.mxu0
        %v740 = vld [vmem:[#allocation2] sm:$0xff]
        %v741 = vld [vmem:[#allocation2 + $0x8] sm:$0xff]
        %v742 = vadd.f32 %v740, %v736
        %v743 = vadd.f32 %v741, %v738
        %744 = vst.msk [vmem:[#allocation2] sm:$0xff] %vm319, %v742
        %745 = vst.msk [vmem:[#allocation2 + $0x8] sm:$0xff] %vm319, %v743
        %s746 = scalar_lea.vmem %s2, 56
        %v747 = vld [vmem:[%s746] sm:$0xf]
        %v748 = vld [vmem:[%s746 + $0x4] sm:$0xf]
        %749 = vst [vmem:[#allocation1] ss:$4 sm:$0xff] %v275
        %s750 = scalar_lea.vmem [#allocation1], 1
        %751 = vst [vmem:[%s750] ss:$4 sm:$0xff] %v277
        %s752 = scalar_lea.vmem [#allocation1], 2
        %753 = vst [vmem:[%s752] ss:$4 sm:$0xff] %v279
        %s755 = scalar_lea.vmem [#allocation1], 3
        %756 = vst [vmem:[%s755] ss:$4 sm:$0xff] %v281
        %v757 = vld.sshfl [vmem:[#allocation1] sm:$0xff pattern:$0x73625140]
        %v760 = vunpack.c.l.b16 %v747
        %v761 = vunpack.c.l.b16 %v748
        %v762 = vpack.c.b16 %v761, %v760
        %v764 = vsel %vm302, %v757, 0
        %766 = vmatpush.bf16.msra.mxu0 0
        %767 = vmatpush.bf16.msra.mxu0 0
        %768 = vmatpush.bf16.msra.mxu0 0
        %769 = vmatpush.bf16.msra.mxu0 0
        %770 = vmatpush.bf16.msra.mxu0 0
        %771 = vmatpush.bf16.msra.mxu0 0
        %772 = vmatpush.bf16.msra.mxu0 0
        %773 = vmatpush.bf16.msra.mxu0 %v762
        %774 = vmatmul.bf16.gmra.mxu0 %v764
        %v775 = vpop.f32.mrf.mxu0
        %v776 = vadd.f32 0.0, %v775
        %v777 = vpop.f32.mrf.mxu0
        %v778 = vadd.f32 0.0, %v777
        %779 = vdwg.mxu0
        %v780 = vld [vmem:[#allocation2] sm:$0xff]
        %v781 = vld [vmem:[#allocation2 + $0x8] sm:$0xff]
        %v782 = vadd.f32 %v780, %v776
        %v783 = vadd.f32 %v781, %v778
        %784 = vst.msk [vmem:[#allocation2] sm:$0xff] %vm319, %v782
        %785 = vst.msk [vmem:[#allocation2 + $0x8] sm:$0xff] %vm319, %v783
        %v787 = vrot.slane %v270, 2
        %v789 = vsel %vm373, %v270, %v787
        %v790 = vsel %vm376, %v270, %v787
        %v792 = vrot.slane %v790, 2
        %v793 = vshrl.u32 %v789, 16
        %v795 = vrot.slane %v793, 6
        %v796 = vshll.u32 %v789, 16
        %v798 = vrot.slane %v796, 7
        %v799 = vor.u32 %v795, %v798
        %v800 = vrot.slane %v799, 2
        %v802 = vshll.u32 %v792, 16
        %v804 = vrot.slane %v802, 7
        %v805 = vsel %vm401, %v800, %v804
        %s806 = scalar_lea.vmem %s2, 64
        %v807 = vld [vmem:[%s806] sm:$0xf]
        %v808 = vld [vmem:[%s806 + $0x4] sm:$0xf]
        %809 = vst [vmem:[#allocation1] ss:$4 sm:$0xff] %v427
        %s810 = scalar_lea.vmem [#allocation1], 1
        %811 = vst [vmem:[%s810] ss:$4 sm:$0xff] %v440
        %s812 = scalar_lea.vmem [#allocation1], 2
        %813 = vst [vmem:[%s812] ss:$4 sm:$0xff] %v453
        %s815 = scalar_lea.vmem [#allocation1], 3
        %816 = vst [vmem:[%s815] ss:$4 sm:$0xff] %v805
        %v817 = vld.sshfl [vmem:[#allocation1] sm:$0xff pattern:$0x73625140]
        %v820 = vunpack.c.l.b16 %v807
        %v821 = vunpack.c.l.b16 %v808
        %v822 = vpack.c.b16 %v821, %v820
        %v824 = vsel %vm302, %v817, 0
        %826 = vmatpush.bf16.msra.mxu0 0
        %827 = vmatpush.bf16.msra.mxu0 0
        %828 = vmatpush.bf16.msra.mxu0 0
        %829 = vmatpush.bf16.msra.mxu0 0
        %830 = vmatpush.bf16.msra.mxu0 0
        %831 = vmatpush.bf16.msra.mxu0 0
        %832 = vmatpush.bf16.msra.mxu0 0
        %833 = vmatpush.bf16.msra.mxu0 %v822
        %834 = vmatmul.bf16.gmra.mxu0 %v824
        %v835 = vpop.f32.mrf.mxu0
        %v836 = vadd.f32 0.0, %v835
        %v837 = vpop.f32.mrf.mxu0
        %v838 = vadd.f32 0.0, %v837
        %839 = vdwg.mxu0
        %v840 = vld [vmem:[#allocation2] sm:$0xff]
        %v841 = vld [vmem:[#allocation2 + $0x8] sm:$0xff]
        %v842 = vadd.f32 %v840, %v836
        %v843 = vadd.f32 %v841, %v838
        %844 = vst.msk [vmem:[#allocation2] sm:$0xff] %vm319, %v842
        %845 = vst.msk [vmem:[#allocation2 + $0x8] sm:$0xff] %vm319, %v843
        %v846 = vld [vmem:[#allocation2] sm:$0xff]
        %v847 = vld [vmem:[#allocation2 + $0x8] sm:$0xff]
        %v848 = vld [vmem:[%s3] sm:$0x1]
        %v850 = vperm.slane %v848, 0
        %v852 = vmul.f32 %v846, %v850
        %v853 = vmul.f32 %v847, %v850
        %v854 = vld [vmem:[%s4] sm:$0x1]
        %v856 = vperm.slane %v854, 0
        %v858 = vadd.f32 %v852, %v856
        %v859 = vadd.f32 %v853, %v856
        %v862 = vrot.slane %v858, 4
        %v863 = vrot.slane %v859, 4
        %vm866 = vcmask 257024
        %867 = vst.msk [vmem:[%s246] sm:$0xf] %vm866, %v858
        %868 = vst.msk [vmem:[%s246 + $0x4] sm:$0xf] %vm866, %v862
        %869 = vst.msk [vmem:[%s246 + $0x8] sm:$0xf] %vm866, %v859
        %870 = vst.msk [vmem:[%s246 + $0xc] sm:$0xf] %vm866, %v863
        %s871 = sand.u32 %s156, 1
        %s872 = scalar_lea.sflag [#allocation4], %s871
        %s873 = sand.u32 %s156, 1
        %s874 = smul.addr %s873, 16
        %s875 = scalar_lea.vmem [#allocation3], %s874
        // Predicated region
        $region41: #{conv_patch_embed_forward.3} parent=39 // pred_check
          %p876 = pneg %p166
        $region42: #{conv_patch_embed_forward.3} parent=39 // pred_check_branch
          %878 = sbr.rel (%p876) target = $region44
        $region43: #{conv_patch_embed_forward.3} parent=39 // pred_region
          %s879 = smul.u32 4, %s24
          %881 = vsyncadd %s872, 0
          %s882 = smul.addr %s23, 4
          %s883 = sadd.s32 %s879, %s882
          %s884 = smul.addr %s883, 4
          %s885 = scalar_lea.hbm %s5, %s884
          %s886 = sshll.u32 %s875, 4
          %s887 = int_to_ptr.vmem [resolvable:$true] %s886
          %s888 = sshll.u32 %s885, 4
          %s889 = int_to_ptr.hbm [resolvable:$true] %s888
          %894 = dma.vmem_to_hbm [thread:$0]  %s887, 256, %s889, %s872, 64, 64, 4
        $region44: #{conv_patch_embed_forward.3} parent=39 // pred_fallthru
          _
      $region40: #{conv_patch_embed_forward.3} parent=5 // pred_fallthru
        _
      %p895 = scmp.le.s32.totalorder 2, %s14
      // Predicated region
      $region45: #{conv_patch_embed_forward.3} parent=5 // pred_check
        %p896 = pneg %p895
      $region46: #{conv_patch_embed_forward.3} parent=5 // pred_check_branch
        %898 = sbr.rel (%p896) target = $region48
      $region47: #{conv_patch_embed_forward.3} parent=5 // pred_region
        %s899 = ssub.s32 %s14, 2
        // Predicated region
        $region49: #{conv_patch_embed_forward.3} parent=47 // pred_check
          %p900 = pneg %p172
        $region50: #{conv_patch_embed_forward.3} parent=47 // pred_check_branch
          %902 = sbr.rel (%p900) target = $region52
        $region51: #{conv_patch_embed_forward.3} parent=47 // pred_region
          %s903 = sand.u32 %s157, 1
          %s904 = scalar_lea.sflag [#allocation4], %s903
          %s905 = sand.u32 %s157, 1
          %s906 = smul.addr %s905, 16
          %s907 = scalar_lea.vmem [#allocation3], %s906
          %909 = dma.done %s904, 256
        $region52: #{conv_patch_embed_forward.3} parent=47 // pred_fallthru
          _
      $region48: #{conv_patch_embed_forward.3} parent=5 // pred_fallthru
        _
    $region6: #{conv_patch_embed_forward.3} parent=1 // loop_footer
      %s18 = sadd.s32 1, %s14
    $region7: #{conv_patch_embed_forward.3} parent=1 // loop_footer_branch
      %13 = sbr.rel target = $region3
    $region8: #{conv_patch_embed_forward.3} parent=1 // loop_exit
      _
    %910 = vsyncpa [#allocation4], 1
    %s911 = scalar_lea.sflag [#allocation4], 1
    %912 = vsyncpa %s911, 1

// kernel: conv_patch_embed_forward.2
$region0: #{conv_patch_embed_forward.2}
  #allocation0 [shape = 'u32[]', space=smem, size = 0x4, offset = 0x4, fixed_abs, tag = 'smem constant byte address 0x4 - core index']
  #allocation1 [shape = 'u32[72,128]{1,0:T(1,128)}', space=vmem, size = 0x9000, scoped, tag = 'internal scratch']
  #allocation2 [shape = 'f32[64,16]{1,0:T(8,128)}', space=vmem, size = 0x8000, scoped, tag = 'scratch operand']
  %s0 = inlined_call_operand.vmem [shape: bf16[2,18,9,4], index: 0, kind: input, shape index: {}]
  %s1 = inlined_call_operand.vmem [shape: bf16[2,18,9,4], index: 1, kind: input, shape index: {}]
  %s2 = inlined_call_operand.vmem [shape: bf16[9,4,16], index: 2, kind: input, shape index: {}]
  %s3 = inlined_call_operand.vmem [shape: f32[1,16], index: 3, kind: input, shape index: {}]
  %s4 = inlined_call_operand.vmem [shape: f32[1,16], index: 4, kind: input, shape index: {}]
  %s5 = inlined_call_operand.vmem [shape: bf16[2,8,8,16], index: 5, kind: output, shape index: {}]
  %s6 = sld [smem:[#allocation0]]
  $region53: #{conv_patch_embed_forward.2} parent=0
    _
  %s8 = ssub.s32 1, %s6
  %s9 = scalar_select 0, %s8, %s6
  loop: start=0, step=1, limit=4
  $region2: #{conv_patch_embed_forward.2} parent=0 // loop_pre_header
    _
  $region3: #{conv_patch_embed_forward.2} parent=0 // loop_header
    %s11 = sphi 0, %s15
    %p12 = scmp.ge.s32.totalorder %s11, 4
    %s18 = sphi 0, %s30
    %s19 = sphi 0, %s26
    %s20 = sphi 0, %s18
    %s21 = sphi 0, %s19
    %s22 = sphi 0, %s20
    %s23 = sphi 0, %s21
    %s33 = sphi 0, %s35
    %s36 = sphi 0, %s33
    %s37 = sphi 0, %s36
    %s53 = sphi 0, %s37
    %s59 = sphi 0, %s61
    %s62 = sphi 0, %s59
    %s63 = sphi 0, %s62
    %s79 = sphi 0, %s63
    %s83 = sphi 0, %s83
    %s85 = sphi 0, %s83
    %s86 = sphi 0, %s85
    %s100 = sphi 0, %s86
    %s104 = sphi 0, %s104
    %s106 = sphi 0, %s104
    %s107 = sphi 0, %s106
    %s121 = sphi 0, %s107
    %s125 = sphi 0, %s125
    %s127 = sphi 0, %s125
    %s128 = sphi 0, %s127
    %s142 = sphi 0, %s128
    %s150 = sphi 0, %s152
    %s153 = sphi 0, %s150
    %s154 = sphi 0, %s153
    %s170 = sphi 0, %s154
  $region4: #{conv_patch_embed_forward.2} parent=0 // loop_header_branch
    %14 = sbr.rel (%p12) target = $region8
  $region5: #{conv_patch_embed_forward.2} parent=0 // loop_body
    %s16 = ssub.s32 %s11, 1
    %s17 = ssub.s32 %s11, 2
    %s24 = sadd.s32 1, %s19
    %p25 = scmp.ge.s32.totalorder %s24, 1
    %s26 = scalar_select %p25, 0, %s24
    %s27 = sadd.s32 1, %s18
    %s28 = scalar_select %p25, %s27, %s18
    %p29 = scmp.ge.s32.totalorder %s28, 2
    %s30 = scalar_select %p29, 0, %s28
    %s31 = ssub.s32 %s18, %s30
    %p32 = scmp.eq.s32.totalorder %s31, 0
    %s34 = sadd.s32 %s33, 1
    %s35 = scalar_select %p32, %s33, %s34
    %p38 = pneg %p32
    %p39 = scmp.eq.s32.totalorder %s11, 1
    %p40 = por %p38, %p39
    %p41 = scmp.ne.s32.totalorder %s33, %s36
    %p42 = scmp.eq.s32.totalorder %s11, 0
    %p43 = por %p41, %p42
    %p44 = scmp.ne.s32.totalorder %s33, %s36
    %p45 = scmp.eq.s32.totalorder %s16, 1
    %p46 = por %p44, %p45
    %p47 = scmp.ne.s32.totalorder %s36, %s37
    %p48 = scmp.eq.s32.totalorder %s16, 0
    %p49 = por %p47, %p48
    %p50 = scmp.ne.s32.totalorder %s36, %s37
    %p51 = scmp.eq.s32.totalorder %s17, 1
    %p52 = por %p50, %p51
    %p54 = scmp.ne.s32.totalorder %s37, %s53
    %p55 = scmp.eq.s32.totalorder %s17, 0
    %p56 = por %p54, %p55
    %s57 = ssub.s32 %s18, %s30
    %p58 = scmp.eq.s32.totalorder %s57, 0
    %s60 = sadd.s32 %s59, 1
    %s61 = scalar_select %p58, %s59, %s60
    %p64 = pneg %p58
    %p65 = scmp.eq.s32.totalorder %s11, 1
    %p66 = por %p64, %p65
    %p67 = scmp.ne.s32.totalorder %s59, %s62
    %p68 = scmp.eq.s32.totalorder %s11, 0
    %p69 = por %p67, %p68
    %p70 = scmp.ne.s32.totalorder %s59, %s62
    %p71 = scmp.eq.s32.totalorder %s16, 1
    %p72 = por %p70, %p71
    %p73 = scmp.ne.s32.totalorder %s62, %s63
    %p74 = scmp.eq.s32.totalorder %s16, 0
    %p75 = por %p73, %p74
    %p76 = scmp.ne.s32.totalorder %s62, %s63
    %p77 = scmp.eq.s32.totalorder %s17, 1
    %p78 = por %p76, %p77
    %p80 = scmp.ne.s32.totalorder %s63, %s79
    %p81 = scmp.eq.s32.totalorder %s17, 0
    %p82 = por %p80, %p81
    %s84 = sadd.s32 %s83, 1
    %p87 = scmp.eq.s32.totalorder %s11, 1
    %p88 = scmp.ne.s32.totalorder %s83, %s85
    %p89 = scmp.eq.s32.totalorder %s11, 0
    %p90 = por %p88, %p89
    %p91 = scmp.ne.s32.totalorder %s83, %s85
    %p92 = scmp.eq.s32.totalorder %s16, 1
    %p93 = por %p91, %p92
    %p94 = scmp.ne.s32.totalorder %s85, %s86
    %p95 = scmp.eq.s32.totalorder %s16, 0
    %p96 = por %p94, %p95
    %p97 = scmp.ne.s32.totalorder %s85, %s86
    %p98 = scmp.eq.s32.totalorder %s17, 1
    %p99 = por %p97, %p98
    %p101 = scmp.ne.s32.totalorder %s86, %s100
    %p102 = scmp.eq.s32.totalorder %s17, 0
    %p103 = por %p101, %p102
    %s105 = sadd.s32 %s104, 1
    %p108 = scmp.eq.s32.totalorder %s11, 1
    %p109 = scmp.ne.s32.totalorder %s104, %s106
    %p110 = scmp.eq.s32.totalorder %s11, 0
    %p111 = por %p109, %p110
    %p112 = scmp.ne.s32.totalorder %s104, %s106
    %p113 = scmp.eq.s32.totalorder %s16, 1
    %p114 = por %p112, %p113
    %p115 = scmp.ne.s32.totalorder %s106, %s107
    %p116 = scmp.eq.s32.totalorder %s16, 0
    %p117 = por %p115, %p116
    %p118 = scmp.ne.s32.totalorder %s106, %s107
    %p119 = scmp.eq.s32.totalorder %s17, 1
    %p120 = por %p118, %p119
    %p122 = scmp.ne.s32.totalorder %s107, %s121
    %p123 = scmp.eq.s32.totalorder %s17, 0
    %p124 = por %p122, %p123
    %s126 = sadd.s32 %s125, 1
    %p129 = scmp.eq.s32.totalorder %s11, 1
    %p130 = scmp.ne.s32.totalorder %s125, %s127
    %p131 = scmp.eq.s32.totalorder %s11, 0
    %p132 = por %p130, %p131
    %p133 = scmp.ne.s32.totalorder %s125, %s127
    %p134 = scmp.eq.s32.totalorder %s16, 1
    %p135 = por %p133, %p134
    %p136 = scmp.ne.s32.totalorder %s127, %s128
    %p137 = scmp.eq.s32.totalorder %s16, 0
    %p138 = por %p136, %p137
    %p139 = scmp.ne.s32.totalorder %s127, %s128
    %p140 = scmp.eq.s32.totalorder %s17, 1
    %p141 = por %p139, %p140
    %p143 = scmp.ne.s32.totalorder %s128, %s142
    %p144 = scmp.eq.s32.totalorder %s17, 0
    %p145 = por %p143, %p144
    %s146 = ssub.s32 %s18, %s30
    %s147 = ssub.s32 %s19, %s26
    %s148 = sor.u32 %s146, %s147
    %p149 = scmp.eq.s32.totalorder %s148, 0
    %s151 = sadd.s32 %s150, 1
    %s152 = scalar_select %p149, %s150, %s151
    %p155 = pneg %p149
    %p156 = scmp.eq.s32.totalorder %s11, 1
    %p157 = por %p155, %p156
    %p158 = scmp.ne.s32.totalorder %s150, %s153
    %p159 = scmp.eq.s32.totalorder %s11, 0
    %p160 = por %p158, %p159
    %p161 = scmp.ne.s32.totalorder %s150, %s153
    %p162 = scmp.eq.s32.totalorder %s16, 1
    %p163 = por %p161, %p162
    %p164 = scmp.ne.s32.totalorder %s153, %s154
    %p165 = scmp.eq.s32.totalorder %s16, 0
    %p166 = por %p164, %p165
    %p167 = scmp.ne.s32.totalorder %s153, %s154
    %p168 = scmp.eq.s32.totalorder %s17, 1
    %p169 = por %p167, %p168
    %p171 = scmp.ne.s32.totalorder %s154, %s170
    %p172 = scmp.eq.s32.totalorder %s17, 0
    %p173 = por %p171, %p172
    %p174 = scmp.le.s32.totalorder 1, %s11
    %p175 = scmp.lt.s32.totalorder %s11, 3
    %p176 = pnand %p174, %p175
    %p177 = pneg %p176
    // Predicated region
    $region9: #{conv_patch_embed_forward.2} parent=5 // pred_check
      _
    $region10: #{conv_patch_embed_forward.2} parent=5 // pred_check_branch
      %179 = sbr.rel (%p176) target = $region12
    $region11: #{conv_patch_embed_forward.2} parent=5 // pred_region
      %s180 = ssub.s32 %s11, 1
      // Predicated region
      $region13: #{conv_patch_embed_forward.2} parent=11 // pred_check
        %p181 = pneg %p96
      $region14: #{conv_patch_embed_forward.2} parent=11 // pred_check_branch
        %183 = sbr.rel (%p181) target = $region16
      $region15: #{conv_patch_embed_forward.2} parent=11 // pred_region
        _
      $region16: #{conv_patch_embed_forward.2} parent=11 // pred_fallthru
        _
      // Predicated region
      $region17: #{conv_patch_embed_forward.2} parent=11 // pred_check
        %p184 = pneg %p117
      $region18: #{conv_patch_embed_forward.2} parent=11 // pred_check_branch
        %186 = sbr.rel (%p184) target = $region20
      $region19: #{conv_patch_embed_forward.2} parent=11 // pred_region
        _
      $region20: #{conv_patch_embed_forward.2} parent=11 // pred_fallthru
        _
      // Predicated region
      $region21: #{conv_patch_embed_forward.2} parent=11 // pred_check
        %p187 = pneg %p138
      $region22: #{conv_patch_embed_forward.2} parent=11 // pred_check_branch
        %189 = sbr.rel (%p187) target = $region24
      $region23: #{conv_patch_embed_forward.2} parent=11 // pred_region
        _
      $region24: #{conv_patch_embed_forward.2} parent=11 // pred_fallthru
        _
    $region12: #{conv_patch_embed_forward.2} parent=5 // pred_fallthru
      _
    %p190 = scmp.lt.s32.totalorder %s11, 2
    // Predicated region
    $region25: #{conv_patch_embed_forward.2} parent=5 // pred_check
      %p191 = pneg %p190
    $region26: #{conv_patch_embed_forward.2} parent=5 // pred_check_branch
      %193 = sbr.rel (%p191) target = $region28
    $region27: #{conv_patch_embed_forward.2} parent=5 // pred_region
      // Predicated region
      $region29: #{conv_patch_embed_forward.2} parent=27 // pred_check
        %p194 = pneg %p43
      $region30: #{conv_patch_embed_forward.2} parent=27 // pred_check_branch
        %196 = sbr.rel (%p194) target = $region32
      $region31: #{conv_patch_embed_forward.2} parent=27 // pred_region
        %p197 = scmp.lt.s32.totalorder %s18, 1
        %s198 = scalar_select %p197, %s18, 1
        %s199 = smul.addr %s198, 36
        %s200 = smul.addr %s199, 4
        %s201 = scalar_lea.vmem %s0, %s200
      $region32: #{conv_patch_embed_forward.2} parent=27 // pred_fallthru
        _
      // Predicated region
      $region33: #{conv_patch_embed_forward.2} parent=27 // pred_check
        %p202 = pneg %p69
      $region34: #{conv_patch_embed_forward.2} parent=27 // pred_check_branch
        %204 = sbr.rel (%p202) target = $region36
      $region35: #{conv_patch_embed_forward.2} parent=27 // pred_region
        %p205 = scmp.lt.s32.totalorder %s18, 1
        %s206 = scalar_select %p205, %s18, 1
        %s207 = smul.addr %s206, 36
        %s208 = smul.addr %s207, 4
        %s209 = scalar_lea.vmem %s1, %s208
      $region36: #{conv_patch_embed_forward.2} parent=27 // pred_fallthru
        _
    $region28: #{conv_patch_embed_forward.2} parent=5 // pred_fallthru
      _
    %p210 = scmp.le.s32.totalorder 1, %s11
    %p211 = scmp.lt.s32.totalorder %s11, 3
    %p212 = pnand %p210, %p211
    %p213 = pneg %p212
    // Predicated region
    $region37: #{conv_patch_embed_forward.2} parent=5 // pred_check
      _
    $region38: #{conv_patch_embed_forward.2} parent=5 // pred_check_branch
      %215 = sbr.rel (%p212) target = $region40
    $region39: #{conv_patch_embed_forward.2} parent=5 // pred_region
      %s216 = ssub.s32 %s11, 1
      %p217 = scmp.lt.s32.totalorder %s20, 1
      %s218 = scalar_select %p217, %s20, 1
      %s219 = smul.addr %s218, 36
      %s220 = smul.addr %s219, 4
      %s221 = scalar_lea.vmem %s0, %s220
      %p222 = pneg %p49
      %p223 = pneg %p46
      %p224 = scmp.lt.s32.totalorder %s20, 1
      %s225 = scalar_select %p224, %s20, 1
      %s226 = smul.addr %s225, 36
      %s227 = smul.addr %s226, 4
      %s228 = scalar_lea.vmem %s1, %s227
      %p229 = pneg %p75
      %p230 = pneg %p72
      %p231 = pneg %p96
      %p232 = pneg %p93
      %p233 = pneg %p117
      %p234 = pneg %p114
      %p235 = pneg %p138
      %p236 = pneg %p135
      %p237 = pneg %p166
      %p238 = pneg %p163
      %s239 = smul.u32 8, %s21
      %p240 = scmp.lt.s32.totalorder %s20, 1
      %s241 = scalar_select %p240, %s20, 1
      %p242 = scmp.lt.s32.totalorder %s239, 7
      %s243 = scalar_select %p242, %s239, 7
      %s244 = smul.addr %s241, 8
      %s245 = sadd.s32 %s243, %s244
      %s246 = smul.addr %s245, 4
      %s247 = scalar_lea.vmem %s5, %s246
      %p248 = scmp.lt.s32.totalorder %s20, 1
      %s249 = scalar_select %p248, %s20, 1
      %s250 = smul.addr %s249, 36
      %s251 = smul.addr %s250, 4
      %s252 = scalar_lea.vmem %s0, %s251
      %p253 = scmp.lt.s32.totalorder %s20, 1
      %s254 = scalar_select %p253, %s20, 1
      %s255 = smul.addr %s254, 36
      %s256 = smul.addr %s255, 4
      %s257 = scalar_lea.vmem %s1, %s256
      %s258 = smul.u32 8, %s21
      %p259 = scmp.lt.s32.totalorder %s20, 1
      %s260 = scalar_select %p259, %s20, 1
      %p261 = scmp.lt.s32.totalorder %s258, 7
      %s262 = scalar_select %p261, %s258, 7
      %s263 = smul.addr %s260, 8
      %s264 = sadd.s32 %s262, %s263
      %s265 = smul.addr %s264, 4
      %s266 = scalar_lea.vmem %s5, %s265
      %s267 = smul.u32 8, %s21
      %s269 = smul.u32 %s21, 16
      %s270 = smul.u32 %s269, 2
      %s271 = smul.addr %s270, 4
      %s272 = scalar_lea.vmem %s252, %s271
      %v273 = vld [vmem:[%s272] sm:$0xf]
      %v274 = vld [vmem:[%s272 + $0x4] sm:$0x1]
      %v275 = vld [vmem:[%s272 + $0x8] sm:$0xf]
      %v276 = vld [vmem:[%s272 + $0xc] sm:$0x1]
      %v277 = vld [vmem:[%s272 + $0x10] sm:$0xf]
      %v278 = vld [vmem:[%s272 + $0x14] sm:$0x1]
      %v279 = vld [vmem:[%s272 + $0x18] sm:$0xf]
      %v280 = vld [vmem:[%s272 + $0x1c] sm:$0x1]
      %v281 = vld [vmem:[%s272 + $0x20] sm:$0xf]
      %v282 = vld [vmem:[%s272 + $0x24] sm:$0x1]
      %v283 = vld [vmem:[%s272 + $0x28] sm:$0xf]
      %v284 = vld [vmem:[%s272 + $0x2c] sm:$0x1]
      %v285 = vld [vmem:[%s272 + $0x30] sm:$0xf]
      %v286 = vld [vmem:[%s272 + $0x34] sm:$0x1]
      %v287 = vld [vmem:[%s272 + $0x38] sm:$0xf]
      %v288 = vld [vmem:[%s272 + $0x3c] sm:$0x1]
      %v289 = vld [vmem:[%s272 + $0x40] sm:$0xf]
      %v290 = vld [vmem:[%s272 + $0x44] sm:$0x1]
      %v291 = vld [vmem:[%s272 + $0x48] sm:$0xf]
      %v292 = vld [vmem:[%s272 + $0x4c] sm:$0x1]
      %v293 = vld [vmem:[%s272 + $0x50] sm:$0xf]
      %v294 = vld [vmem:[%s272 + $0x54] sm:$0x1]
      %v295 = vld [vmem:[%s272 + $0x58] sm:$0xf]
      %v296 = vld [vmem:[%s272 + $0x5c] sm:$0x1]
      %v297 = vld [vmem:[%s272 + $0x60] sm:$0xf]
      %v298 = vld [vmem:[%s272 + $0x64] sm:$0x1]
      %v299 = vld [vmem:[%s272 + $0x68] sm:$0xf]
      %v300 = vld [vmem:[%s272 + $0x6c] sm:$0x1]
      %v301 = vld [vmem:[%s272 + $0x70] sm:$0xf]
      %v302 = vld [vmem:[%s272 + $0x74] sm:$0x1]
      %v303 = vld [vmem:[%s272 + $0x78] sm:$0xf]
      %v304 = vld [vmem:[%s272 + $0x7c] sm:$0x1]
      %v305 = vld [vmem:[%s272 + $0x80] sm:$0xf]
      %v306 = vld [vmem:[%s272 + $0x84] sm:$0x1]
      %s307 = smul.addr %s270, 4
      %s308 = scalar_lea.vmem %s257, %s307
      %v309 = vld [vmem:[%s308] sm:$0xf]
      %v310 = vld [vmem:[%s308 + $0x8] sm:$0xf]
      %v311 = vld [vmem:[%s308 + $0x10] sm:$0xf]
      %v312 = vld [vmem:[%s308 + $0x18] sm:$0xf]
      %v313 = vld [vmem:[%s308 + $0x20] sm:$0xf]
      %v314 = vld [vmem:[%s308 + $0x28] sm:$0xf]
      %v315 = vld [vmem:[%s308 + $0x30] sm:$0xf]
      %v316 = vld [vmem:[%s308 + $0x38] sm:$0xf]
      %v317 = vld [vmem:[%s308 + $0x40] sm:$0xf]
      %v318 = vld [vmem:[%s308 + $0x48] sm:$0xf]
      %v319 = vld [vmem:[%s308 + $0x50] sm:$0xf]
      %v320 = vld [vmem:[%s308 + $0x58] sm:$0xf]
      %v321 = vld [vmem:[%s308 + $0x60] sm:$0xf]
      %v322 = vld [vmem:[%s308 + $0x68] sm:$0xf]
      %v323 = vld [vmem:[%s308 + $0x70] sm:$0xf]
      %v324 = vld [vmem:[%s308 + $0x78] sm:$0xf]
      %v325 = vld [vmem:[%s308 + $0x80] sm:$0xf]
      %v326 = vld [vmem:[%s2] sm:$0x3]
      %v335 = vunpack.c.l.b16 %v273
      %v336 = vunpack.c.l.b16 %v277
      %v337 = vunpack.c.l.b16 %v281
      %v338 = vunpack.c.l.b16 %v285
      %v339 = vunpack.c.l.b16 %v289
      %v340 = vunpack.c.l.b16 %v293
      %v341 = vunpack.c.l.b16 %v297
      %v342 = vunpack.c.l.b16 %v301
      %v343 = vpack.c.b16 %v336, %v335
      %v344 = vpack.c.b16 %v338, %v337
      %v345 = vpack.c.b16 %v340, %v339
      %v346 = vpack.c.b16 %v342, %v341
      %vm347 = vcmask 31744
      %v349 = vsel %vm347, %v343, 0
      %v352 = vsel %vm347, %v344, 0
      %v355 = vsel %vm347, %v345, 0
      %v358 = vsel %vm347, %v346, 0
      %vm360 = vcmask 1041408
      %v362 = vsel %vm360, %v326, 0
      %364 = vmatpush.bf16.msra.mxu0 0
      %365 = vmatpush.bf16.msra.mxu0 0
      %366 = vmatpush.bf16.msra.mxu0 0
      %367 = vmatpush.bf16.msra.mxu0 0
      %368 = vmatpush.bf16.msra.mxu0 0
      %369 = vmatpush.bf16.msra.mxu0 0
      %370 = vmatpush.bf16.msra.mxu0 0
      %371 = vmatpush.bf16.msra.mxu0 %v362
      %372 = vmatmul.bf16.gmra.mxu0 %v349
      %v373 = vpop.f32.mrf.mxu0
      %v374 = vadd.f32 0.0, %v373
      %v375 = vpop.f32.mrf.mxu0
      %v376 = vadd.f32 0.0, %v375
      %377 = vmatmul.bf16.gmra.mxu0 %v352
      %v378 = vpop.f32.mrf.mxu0
      %v379 = vadd.f32 0.0, %v378
      %v380 = vpop.f32.mrf.mxu0
      %v381 = vadd.f32 0.0, %v380
      %382 = vmatmul.bf16.gmra.mxu0 %v355
      %v383 = vpop.f32.mrf.mxu0
      %v384 = vadd.f32 0.0, %v383
      %v385 = vpop.f32.mrf.mxu0
      %v386 = vadd.f32 0.0, %v385
      %387 = vmatmul.bf16.gmra.mxu0 %v358
      %v388 = vpop.f32.mrf.mxu0
      %v389 = vadd.f32 0.0, %v388
      %v390 = vpop.f32.mrf.mxu0
      %v391 = vadd.f32 0.0, %v390
      %392 = vdwg.mxu0
      %vm393 = vcmask 130048
      %394 = vst.msk [vmem:[#allocation2] sm:$0xff] %vm393, %v374
      %395 = vst.msk [vmem:[#allocation2 + $0x8] sm:$0xff] %vm393, %v376
      %396 = vst.msk [vmem:[#allocation2 + $0x10] sm:$0xff] %vm393, %v379
      %397 = vst.msk [vmem:[#allocation2 + $0x18] sm:$0xff] %vm393, %v381
      %398 = vst.msk [vmem:[#allocation2 + $0x20] sm:$0xff] %vm393, %v384
      %399 = vst.msk [vmem:[#allocation2 + $0x28] sm:$0xff] %vm393, %v386
      %400 = vst.msk [vmem:[#allocation2 + $0x30] sm:$0xff] %vm393, %v389
      %401 = vst.msk [vmem:[#allocation2 + $0x38] sm:$0xff] %vm393, %v391
      %s402 = scalar_lea.vmem %s2, 2
      %v403 = vld [vmem:[%s402] sm:$0x3]
      %v412 = vunpack.c.l.b16 %v309
      %v413 = vunpack.c.l.b16 %v311
      %v414 = vunpack.c.l.b16 %v313
      %v415 = vunpack.c.l.b16 %v315
      %v416 = vunpack.c.l.b16 %v317
      %v417 = vunpack.c.l.b16 %v319
      %v418 = vunpack.c.l.b16 %v321
      %v419 = vunpack.c.l.b16 %v323
      %v420 = vpack.c.b16 %v413, %v412
      %v421 = vpack.c.b16 %v415, %v414
      %v422 = vpack.c.b16 %v417, %v416
      %v423 = vpack.c.b16 %v419, %v418
      %v425 = vsel %vm347, %v420, 0
      %v428 = vsel %vm347, %v421, 0
      %v431 = vsel %vm347, %v422, 0
      %v434 = vsel %vm347, %v423, 0
      %v437 = vsel %vm360, %v403, 0
      %439 = vmatpush.bf16.msra.mxu0 0
      %440 = vmatpush.bf16.msra.mxu0 0
      %441 = vmatpush.bf16.msra.mxu0 0
      %442 = vmatpush.bf16.msra.mxu0 0
      %443 = vmatpush.bf16.msra.mxu0 0
      %444 = vmatpush.bf16.msra.mxu0 0
      %445 = vmatpush.bf16.msra.mxu0 0
      %446 = vmatpush.bf16.msra.mxu0 %v437
      %447 = vmatmul.bf16.gmra.mxu0 %v425
      %v448 = vpop.f32.mrf.mxu0
      %v449 = vadd.f32 0.0, %v448
      %v450 = vpop.f32.mrf.mxu0
      %v451 = vadd.f32 0.0, %v450
      %452 = vmatmul.bf16.gmra.mxu0 %v428
      %v453 = vpop.f32.mrf.mxu0
      %v454 = vadd.f32 0.0, %v453
      %v455 = vpop.f32.mrf.mxu0
      %v456 = vadd.f32 0.0, %v455
      %457 = vmatmul.bf16.gmra.mxu0 %v431
      %v458 = vpop.f32.mrf.mxu0
      %v459 = vadd.f32 0.0, %v458
      %v460 = vpop.f32.mrf.mxu0
      %v461 = vadd.f32 0.0, %v460
      %462 = vmatmul.bf16.gmra.mxu0 %v434
      %v463 = vpop.f32.mrf.mxu0
      %v464 = vadd.f32 0.0, %v463
      %v465 = vpop.f32.mrf.mxu0
      %v466 = vadd.f32 0.0, %v465
      %467 = vdwg.mxu0
      %v468 = vld [vmem:[#allocation2] sm:$0xff]
      %v469 = vld [vmem:[#allocation2 + $0x8] sm:$0xff]
      %v470 = vld [vmem:[#allocation2 + $0x10] sm:$0xff]
      %v471 = vld [vmem:[#allocation2 + $0x18] sm:$0xff]
      %v472 = vld [vmem:[#allocation2 + $0x20] sm:$0xff]
      %v473 = vld [vmem:[#allocation2 + $0x28] sm:$0xff]
      %v474 = vld [vmem:[#allocation2 + $0x30] sm:$0xff]
      %v475 = vld [vmem:[#allocation2 + $0x38] sm:$0xff]
      %v476 = vadd.f32 %v468, %v449
      %v477 = vadd.f32 %v469, %v451
      %v478 = vadd.f32 %v470, %v454
      %v479 = vadd.f32 %v471, %v456
      %v480 = vadd.f32 %v472, %v459
      %v481 = vadd.f32 %v473, %v461
      %v482 = vadd.f32 %v474, %v464
      %v483 = vadd.f32 %v475, %v466
      %484 = vst.msk [vmem:[#allocation2] sm:$0xff] %vm393, %v476
      %485 = vst.msk [vmem:[#allocation2 + $0x8] sm:$0xff] %vm393, %v477
      %486 = vst.msk [vmem:[#allocation2 + $0x10] sm:$0xff] %vm393, %v478
      %487 = vst.msk [vmem:[#allocation2 + $0x18] sm:$0xff] %vm393, %v479
      %488 = vst.msk [vmem:[#allocation2 + $0x20] sm:$0xff] %vm393, %v480
      %489 = vst.msk [vmem:[#allocation2 + $0x28] sm:$0xff] %vm393, %v481
      %490 = vst.msk [vmem:[#allocation2 + $0x30] sm:$0xff] %vm393, %v482
      %491 = vst.msk [vmem:[#allocation2 + $0x38] sm:$0xff] %vm393, %v483
      %vm492 = vsmask.f32 3328
      %vm493 = vsmask.f32 7440
      %vm494 = vmor %vm492, %vm493
      %v496 = vshrl.u32 %v273, 16
      %v498 = vrot.slane %v496, 4
      %v499 = vshll.u32 %v273, 16
      %v501 = vrot.slane %v499, 5
      %v502 = vor.u32 %v498, %v501
      %v503 = vrot.slane %v502, 4
      %v505 = vshll.u32 %v274, 16
      %v507 = vrot.slane %v505, 5
      %v508 = vsel %vm494, %v503, %v507
      %v510 = vshrl.u32 %v277, 16
      %v512 = vrot.slane %v510, 4
      %v513 = vshll.u32 %v277, 16
      %v515 = vrot.slane %v513, 5
      %v516 = vor.u32 %v512, %v515
      %v517 = vrot.slane %v516, 4
      %v519 = vshll.u32 %v278, 16
      %v521 = vrot.slane %v519, 5
      %v522 = vsel %vm494, %v517, %v521
      %v524 = vshrl.u32 %v281, 16
      %v526 = vrot.slane %v524, 4
      %v527 = vshll.u32 %v281, 16
      %v529 = vrot.slane %v527, 5
      %v530 = vor.u32 %v526, %v529
      %v531 = vrot.slane %v530, 4
      %v533 = vshll.u32 %v282, 16
      %v535 = vrot.slane %v533, 5
      %v536 = vsel %vm494, %v531, %v535
      %v538 = vshrl.u32 %v285, 16
      %v540 = vrot.slane %v538, 4
      %v541 = vshll.u32 %v285, 16
      %v543 = vrot.slane %v541, 5
      %v544 = vor.u32 %v540, %v543
      %v545 = vrot.slane %v544, 4
      %v547 = vshll.u32 %v286, 16
      %v549 = vrot.slane %v547, 5
      %v550 = vsel %vm494, %v545, %v549
      %v552 = vshrl.u32 %v289, 16
      %v554 = vrot.slane %v552, 4
      %v555 = vshll.u32 %v289, 16
      %v557 = vrot.slane %v555, 5
      %v558 = vor.u32 %v554, %v557
      %v559 = vrot.slane %v558, 4
      %v561 = vshll.u32 %v290, 16
      %v563 = vrot.slane %v561, 5
      %v564 = vsel %vm494, %v559, %v563
      %v566 = vshrl.u32 %v293, 16
      %v568 = vrot.slane %v566, 4
      %v569 = vshll.u32 %v293, 16
      %v571 = vrot.slane %v569, 5
      %v572 = vor.u32 %v568, %v571
      %v573 = vrot.slane %v572, 4
      %v575 = vshll.u32 %v294, 16
      %v577 = vrot.slane %v575, 5
      %v578 = vsel %vm494, %v573, %v577
      %v580 = vshrl.u32 %v297, 16
      %v582 = vrot.slane %v580, 4
      %v583 = vshll.u32 %v297, 16
      %v585 = vrot.slane %v583, 5
      %v586 = vor.u32 %v582, %v585
      %v587 = vrot.slane %v586, 4
      %v589 = vshll.u32 %v298, 16
      %v591 = vrot.slane %v589, 5
      %v592 = vsel %vm494, %v587, %v591
      %v594 = vshrl.u32 %v301, 16
      %v596 = vrot.slane %v594, 4
      %v597 = vshll.u32 %v301, 16
      %v599 = vrot.slane %v597, 5
      %v600 = vor.u32 %v596, %v599
      %v601 = vrot.slane %v600, 4
      %v603 = vshll.u32 %v302, 16
      %v605 = vrot.slane %v603, 5
      %v606 = vsel %vm494, %v601, %v605
      %s607 = scalar_lea.vmem %s2, 4
      %v608 = vld [vmem:[%s607] sm:$0x3]
      %v609 = vunpack.c.l.b16 %v508
      %v610 = vunpack.c.l.b16 %v522
      %v611 = vunpack.c.l.b16 %v536
      %v612 = vunpack.c.l.b16 %v550
      %v613 = vunpack.c.l.b16 %v564
      %v614 = vunpack.c.l.b16 %v578
      %v615 = vunpack.c.l.b16 %v592
      %v616 = vunpack.c.l.b16 %v606
      %v617 = vpack.c.b16 %v610, %v609
      %v618 = vpack.c.b16 %v612, %v611
      %v619 = vpack.c.b16 %v614, %v613
      %v620 = vpack.c.b16 %v616, %v615
      %v622 = vsel %vm347, %v617, 0
      %v625 = vsel %vm347, %v618, 0
      %v628 = vsel %vm347, %v619, 0
      %v631 = vsel %vm347, %v620, 0
      %v634 = vsel %vm360, %v608, 0
      %636 = vmatpush.bf16.msra.mxu0 0
      %637 = vmatpush.bf16.msra.mxu0 0
      %638 = vmatpush.bf16.msra.mxu0 0
      %639 = vmatpush.bf16.msra.mxu0 0
      %640 = vmatpush.bf16.msra.mxu0 0
      %641 = vmatpush.bf16.msra.mxu0 0
      %642 = vmatpush.bf16.msra.mxu0 0
      %643 = vmatpush.bf16.msra.mxu0 %v634
      %644 = vmatmul.bf16.gmra.mxu0 %v622
      %v645 = vpop.f32.mrf.mxu0
      %v646 = vadd.f32 0.0, %v645
      %v647 = vpop.f32.mrf.mxu0
      %v648 = vadd.f32 0.0, %v647
      %649 = vmatmul.bf16.gmra.mxu0 %v625
      %v650 = vpop.f32.mrf.mxu0
      %v651 = vadd.f32 0.0, %v650
      %v652 = vpop.f32.mrf.mxu0
      %v653 = vadd.f32 0.0, %v652
      %654 = vmatmul.bf16.gmra.mxu0 %v628
      %v655 = vpop.f32.mrf.mxu0
      %v656 = vadd.f32 0.0, %v655
      %v657 = vpop.f32.mrf.mxu0
      %v658 = vadd.f32 0.0, %v657
      %659 = vmatmul.bf16.gmra.mxu0 %v631
      %v660 = vpop.f32.mrf.mxu0
      %v661 = vadd.f32 0.0, %v660
      %v662 = vpop.f32.mrf.mxu0
      %v663 = vadd.f32 0.0, %v662
      %664 = vdwg.mxu0
      %v665 = vld [vmem:[#allocation2] sm:$0xff]
      %v666 = vld [vmem:[#allocation2 + $0x8] sm:$0xff]
      %v667 = vld [vmem:[#allocation2 + $0x10] sm:$0xff]
      %v668 = vld [vmem:[#allocation2 + $0x18] sm:$0xff]
      %v669 = vld [vmem:[#allocation2 + $0x20] sm:$0xff]
      %v670 = vld [vmem:[#allocation2 + $0x28] sm:$0xff]
      %v671 = vld [vmem:[#allocation2 + $0x30] sm:$0xff]
      %v672 = vld [vmem:[#allocation2 + $0x38] sm:$0xff]
      %v673 = vadd.f32 %v665, %v646
      %v674 = vadd.f32 %v666, %v648
      %v675 = vadd.f32 %v667, %v651
      %v676 = vadd.f32 %v668, %v653
      %v677 = vadd.f32 %v669, %v656
      %v678 = vadd.f32 %v670, %v658
      %v679 = vadd.f32 %v671, %v661
      %v680 = vadd.f32 %v672, %v663
      %681 = vst.msk [vmem:[#allocation2] sm:$0xff] %vm393, %v673
      %682 = vst.msk [vmem:[#allocation2 + $0x8] sm:$0xff] %vm393, %v674
      %683 = vst.msk [vmem:[#allocation2 + $0x10] sm:$0xff] %vm393, %v675
      %684 = vst.msk [vmem:[#allocation2 + $0x18] sm:$0xff] %vm393, %v676
      %685 = vst.msk [vmem:[#allocation2 + $0x20] sm:$0xff] %vm393, %v677
      %686 = vst.msk [vmem:[#allocation2 + $0x28] sm:$0xff] %vm393, %v678
      %687 = vst.msk [vmem:[#allocation2 + $0x30] sm:$0xff] %vm393, %v679
      %688 = vst.msk [vmem:[#allocation2 + $0x38] sm:$0xff] %vm393, %v680
      %s689 = scalar_lea.vmem %s2, 6
      %v690 = vld [vmem:[%s689] sm:$0x3]
      %v699 = vunpack.c.l.b16 %v275
      %v700 = vunpack.c.l.b16 %v279
      %v701 = vunpack.c.l.b16 %v283
      %v702 = vunpack.c.l.b16 %v287
      %v703 = vunpack.c.l.b16 %v291
      %v704 = vunpack.c.l.b16 %v295
      %v705 = vunpack.c.l.b16 %v299
      %v706 = vunpack.c.l.b16 %v303
      %v707 = vpack.c.b16 %v700, %v699
      %v708 = vpack.c.b16 %v702, %v701
      %v709 = vpack.c.b16 %v704, %v703
      %v710 = vpack.c.b16 %v706, %v705
      %v712 = vsel %vm347, %v707, 0
      %v715 = vsel %vm347, %v708, 0
      %v718 = vsel %vm347, %v709, 0
      %v721 = vsel %vm347, %v710, 0
      %v724 = vsel %vm360, %v690, 0
      %726 = vmatpush.bf16.msra.mxu0 0
      %727 = vmatpush.bf16.msra.mxu0 0
      %728 = vmatpush.bf16.msra.mxu0 0
      %729 = vmatpush.bf16.msra.mxu0 0
      %730 = vmatpush.bf16.msra.mxu0 0
      %731 = vmatpush.bf16.msra.mxu0 0
      %732 = vmatpush.bf16.msra.mxu0 0
      %733 = vmatpush.bf16.msra.mxu0 %v724
      %734 = vmatmul.bf16.gmra.mxu0 %v712
      %v735 = vpop.f32.mrf.mxu0
      %v736 = vadd.f32 0.0, %v735
      %v737 = vpop.f32.mrf.mxu0
      %v738 = vadd.f32 0.0, %v737
      %739 = vmatmul.bf16.gmra.mxu0 %v715
      %v740 = vpop.f32.mrf.mxu0
      %v741 = vadd.f32 0.0, %v740
      %v742 = vpop.f32.mrf.mxu0
      %v743 = vadd.f32 0.0, %v742
      %744 = vmatmul.bf16.gmra.mxu0 %v718
      %v745 = vpop.f32.mrf.mxu0
      %v746 = vadd.f32 0.0, %v745
      %v747 = vpop.f32.mrf.mxu0
      %v748 = vadd.f32 0.0, %v747
      %749 = vmatmul.bf16.gmra.mxu0 %v721
      %v750 = vpop.f32.mrf.mxu0
      %v751 = vadd.f32 0.0, %v750
      %v752 = vpop.f32.mrf.mxu0
      %v753 = vadd.f32 0.0, %v752
      %754 = vdwg.mxu0
      %v755 = vld [vmem:[#allocation2] sm:$0xff]
      %v756 = vld [vmem:[#allocation2 + $0x8] sm:$0xff]
      %v757 = vld [vmem:[#allocation2 + $0x10] sm:$0xff]
      %v758 = vld [vmem:[#allocation2 + $0x18] sm:$0xff]
      %v759 = vld [vmem:[#allocation2 + $0x20] sm:$0xff]
      %v760 = vld [vmem:[#allocation2 + $0x28] sm:$0xff]
      %v761 = vld [vmem:[#allocation2 + $0x30] sm:$0xff]
      %v762 = vld [vmem:[#allocation2 + $0x38] sm:$0xff]
      %v763 = vadd.f32 %v755, %v736
      %v764 = vadd.f32 %v756, %v738
      %v765 = vadd.f32 %v757, %v741
      %v766 = vadd.f32 %v758, %v743
      %v767 = vadd.f32 %v759, %v746
      %v768 = vadd.f32 %v760, %v748
      %v769 = vadd.f32 %v761, %v751
      %v770 = vadd.f32 %v762, %v753
      %771 = vst.msk [vmem:[#allocation2] sm:$0xff] %vm393, %v763
      %772 = vst.msk [vmem:[#allocation2 + $0x8] sm:$0xff] %vm393, %v764
      %773 = vst.msk [vmem:[#allocation2 + $0x10] sm:$0xff] %vm393, %v765
      %774 = vst.msk [vmem:[#allocation2 + $0x18] sm:$0xff] %vm393, %v766
      %775 = vst.msk [vmem:[#allocation2 + $0x20] sm:$0xff] %vm393, %v767
      %776 = vst.msk [vmem:[#allocation2 + $0x28] sm:$0xff] %vm393, %v768
      %777 = vst.msk [vmem:[#allocation2 + $0x30] sm:$0xff] %vm393, %v769
      %778 = vst.msk [vmem:[#allocation2 + $0x38] sm:$0xff] %vm393, %v770
      %s779 = scalar_lea.vmem %s2, 8
      %v780 = vld [vmem:[%s779] sm:$0x3]
      %v789 = vunpack.c.l.b16 %v310
      %v790 = vunpack.c.l.b16 %v312
      %v791 = vunpack.c.l.b16 %v314
      %v792 = vunpack.c.l.b16 %v316
      %v793 = vunpack.c.l.b16 %v318
      %v794 = vunpack.c.l.b16 %v320
      %v795 = vunpack.c.l.b16 %v322
      %v796 = vunpack.c.l.b16 %v324
      %v797 = vpack.c.b16 %v790, %v789
      %v798 = vpack.c.b16 %v792, %v791
      %v799 = vpack.c.b16 %v794, %v793
      %v800 = vpack.c.b16 %v796, %v795
      %v802 = vsel %vm347, %v797, 0
      %v805 = vsel %vm347, %v798, 0
      %v808 = vsel %vm347, %v799, 0
      %v811 = vsel %vm347, %v800, 0
      %v814 = vsel %vm360, %v780, 0
      %816 = vmatpush.bf16.msra.mxu0 0
      %817 = vmatpush.bf16.msra.mxu0 0
      %818 = vmatpush.bf16.msra.mxu0 0
      %819 = vmatpush.bf16.msra.mxu0 0
      %820 = vmatpush.bf16.msra.mxu0 0
      %821 = vmatpush.bf16.msra.mxu0 0
      %822 = vmatpush.bf16.msra.mxu0 0
      %823 = vmatpush.bf16.msra.mxu0 %v814
      %824 = vmatmul.bf16.gmra.mxu0 %v802
      %v825 = vpop.f32.mrf.mxu0
      %v826 = vadd.f32 0.0, %v825
      %v827 = vpop.f32.mrf.mxu0
      %v828 = vadd.f32 0.0, %v827
      %829 = vmatmul.bf16.gmra.mxu0 %v805
      %v830 = vpop.f32.mrf.mxu0
      %v831 = vadd.f32 0.0, %v830
      %v832 = vpop.f32.mrf.mxu0
      %v833 = vadd.f32 0.0, %v832
      %834 = vmatmul.bf16.gmra.mxu0 %v808
      %v835 = vpop.f32.mrf.mxu0
      %v836 = vadd.f32 0.0, %v835
      %v837 = vpop.f32.mrf.mxu0
      %v838 = vadd.f32 0.0, %v837
      %839 = vmatmul.bf16.gmra.mxu0 %v811
      %v840 = vpop.f32.mrf.mxu0
      %v841 = vadd.f32 0.0, %v840
      %v842 = vpop.f32.mrf.mxu0
      %v843 = vadd.f32 0.0, %v842
      %844 = vdwg.mxu0
      %v845 = vld [vmem:[#allocation2] sm:$0xff]
      %v846 = vld [vmem:[#allocation2 + $0x8] sm:$0xff]
      %v847 = vld [vmem:[#allocation2 + $0x10] sm:$0xff]
      %v848 = vld [vmem:[#allocation2 + $0x18] sm:$0xff]
      %v849 = vld [vmem:[#allocation2 + $0x20] sm:$0xff]
      %v850 = vld [vmem:[#allocation2 + $0x28] sm:$0xff]
      %v851 = vld [vmem:[#allocation2 + $0x30] sm:$0xff]
      %v852 = vld [vmem:[#allocation2 + $0x38] sm:$0xff]
      %v853 = vadd.f32 %v845, %v826
      %v854 = vadd.f32 %v846, %v828
      %v855 = vadd.f32 %v847, %v831
      %v856 = vadd.f32 %v848, %v833
      %v857 = vadd.f32 %v849, %v836
      %v858 = vadd.f32 %v850, %v838
      %v859 = vadd.f32 %v851, %v841
      %v860 = vadd.f32 %v852, %v843
      %861 = vst.msk [vmem:[#allocation2] sm:$0xff] %vm393, %v853
      %862 = vst.msk [vmem:[#allocation2 + $0x8] sm:$0xff] %vm393, %v854
      %863 = vst.msk [vmem:[#allocation2 + $0x10] sm:$0xff] %vm393, %v855
      %864 = vst.msk [vmem:[#allocation2 + $0x18] sm:$0xff] %vm393, %v856
      %865 = vst.msk [vmem:[#allocation2 + $0x20] sm:$0xff] %vm393, %v857
      %866 = vst.msk [vmem:[#allocation2 + $0x28] sm:$0xff] %vm393, %v858
      %867 = vst.msk [vmem:[#allocation2 + $0x30] sm:$0xff] %vm393, %v859
      %868 = vst.msk [vmem:[#allocation2 + $0x38] sm:$0xff] %vm393, %v860
      %v870 = vshrl.u32 %v275, 16
      %v872 = vrot.slane %v870, 4
      %v873 = vshll.u32 %v275, 16
      %v875 = vrot.slane %v873, 5
      %v876 = vor.u32 %v872, %v875
      %v877 = vrot.slane %v876, 4
      %v879 = vshll.u32 %v276, 16
      %v881 = vrot.slane %v879, 5
      %v882 = vsel %vm494, %v877, %v881
      %v884 = vshrl.u32 %v279, 16
      %v886 = vrot.slane %v884, 4
      %v887 = vshll.u32 %v279, 16
      %v889 = vrot.slane %v887, 5
      %v890 = vor.u32 %v886, %v889
      %v891 = vrot.slane %v890, 4
      %v893 = vshll.u32 %v280, 16
      %v895 = vrot.slane %v893, 5
      %v896 = vsel %vm494, %v891, %v895
      %v898 = vshrl.u32 %v283, 16
      %v900 = vrot.slane %v898, 4
      %v901 = vshll.u32 %v283, 16
      %v903 = vrot.slane %v901, 5
      %v904 = vor.u32 %v900, %v903
      %v905 = vrot.slane %v904, 4
      %v907 = vshll.u32 %v284, 16
      %v909 = vrot.slane %v907, 5
      %v910 = vsel %vm494, %v905, %v909
      %v912 = vshrl.u32 %v287, 16
      %v914 = vrot.slane %v912, 4
      %v915 = vshll.u32 %v287, 16
      %v917 = vrot.slane %v915, 5
      %v918 = vor.u32 %v914, %v917
      %v919 = vrot.slane %v918, 4
      %v921 = vshll.u32 %v288, 16
      %v923 = vrot.slane %v921, 5
      %v924 = vsel %vm494, %v919, %v923
      %v926 = vshrl.u32 %v291, 16
      %v928 = vrot.slane %v926, 4
      %v929 = vshll.u32 %v291, 16
      %v931 = vrot.slane %v929, 5
      %v932 = vor.u32 %v928, %v931
      %v933 = vrot.slane %v932, 4
      %v935 = vshll.u32 %v292, 16
      %v937 = vrot.slane %v935, 5
      %v938 = vsel %vm494, %v933, %v937
      %v940 = vshrl.u32 %v295, 16
      %v942 = vrot.slane %v940, 4
      %v943 = vshll.u32 %v295, 16
      %v945 = vrot.slane %v943, 5
      %v946 = vor.u32 %v942, %v945
      %v947 = vrot.slane %v946, 4
      %v949 = vshll.u32 %v296, 16
      %v951 = vrot.slane %v949, 5
      %v952 = vsel %vm494, %v947, %v951
      %v954 = vshrl.u32 %v299, 16
      %v956 = vrot.slane %v954, 4
      %v957 = vshll.u32 %v299, 16
      %v959 = vrot.slane %v957, 5
      %v960 = vor.u32 %v956, %v959
      %v961 = vrot.slane %v960, 4
      %v963 = vshll.u32 %v300, 16
      %v965 = vrot.slane %v963, 5
      %v966 = vsel %vm494, %v961, %v965
      %v968 = vshrl.u32 %v303, 16
      %v970 = vrot.slane %v968, 4
      %v971 = vshll.u32 %v303, 16
      %v973 = vrot.slane %v971, 5
      %v974 = vor.u32 %v970, %v973
      %v975 = vrot.slane %v974, 4
      %v977 = vshll.u32 %v304, 16
      %v979 = vrot.slane %v977, 5
      %v980 = vsel %vm494, %v975, %v979
      %s981 = scalar_lea.vmem %s2, 10
      %v982 = vld [vmem:[%s981] sm:$0x3]
      %v983 = vunpack.c.l.b16 %v882
      %v984 = vunpack.c.l.b16 %v896
      %v985 = vunpack.c.l.b16 %v910
      %v986 = vunpack.c.l.b16 %v924
      %v987 = vunpack.c.l.b16 %v938
      %v988 = vunpack.c.l.b16 %v952
      %v989 = vunpack.c.l.b16 %v966
      %v990 = vunpack.c.l.b16 %v980
      %v991 = vpack.c.b16 %v984, %v983
      %v992 = vpack.c.b16 %v986, %v985
      %v993 = vpack.c.b16 %v988, %v987
      %v994 = vpack.c.b16 %v990, %v989
      %v996 = vsel %vm347, %v991, 0
      %v999 = vsel %vm347, %v992, 0
      %v1002 = vsel %vm347, %v993, 0
      %v1005 = vsel %vm347, %v994, 0
      %v1008 = vsel %vm360, %v982, 0
      %1010 = vmatpush.bf16.msra.mxu0 0
      %1011 = vmatpush.bf16.msra.mxu0 0
      %1012 = vmatpush.bf16.msra.mxu0 0
      %1013 = vmatpush.bf16.msra.mxu0 0
      %1014 = vmatpush.bf16.msra.mxu0 0
      %1015 = vmatpush.bf16.msra.mxu0 0
      %1016 = vmatpush.bf16.msra.mxu0 0
      %1017 = vmatpush.bf16.msra.mxu0 %v1008
      %1018 = vmatmul.bf16.gmra.mxu0 %v996
      %v1019 = vpop.f32.mrf.mxu0
      %v1020 = vadd.f32 0.0, %v1019
      %v1021 = vpop.f32.mrf.mxu0
      %v1022 = vadd.f32 0.0, %v1021
      %1023 = vmatmul.bf16.gmra.mxu0 %v999
      %v1024 = vpop.f32.mrf.mxu0
      %v1025 = vadd.f32 0.0, %v1024
      %v1026 = vpop.f32.mrf.mxu0
      %v1027 = vadd.f32 0.0, %v1026
      %1028 = vmatmul.bf16.gmra.mxu0 %v1002
      %v1029 = vpop.f32.mrf.mxu0
      %v1030 = vadd.f32 0.0, %v1029
      %v1031 = vpop.f32.mrf.mxu0
      %v1032 = vadd.f32 0.0, %v1031
      %1033 = vmatmul.bf16.gmra.mxu0 %v1005
      %v1034 = vpop.f32.mrf.mxu0
      %v1035 = vadd.f32 0.0, %v1034
      %v1036 = vpop.f32.mrf.mxu0
      %v1037 = vadd.f32 0.0, %v1036
      %1038 = vdwg.mxu0
      %v1039 = vld [vmem:[#allocation2] sm:$0xff]
      %v1040 = vld [vmem:[#allocation2 + $0x8] sm:$0xff]
      %v1041 = vld [vmem:[#allocation2 + $0x10] sm:$0xff]
      %v1042 = vld [vmem:[#allocation2 + $0x18] sm:$0xff]
      %v1043 = vld [vmem:[#allocation2 + $0x20] sm:$0xff]
      %v1044 = vld [vmem:[#allocation2 + $0x28] sm:$0xff]
      %v1045 = vld [vmem:[#allocation2 + $0x30] sm:$0xff]
      %v1046 = vld [vmem:[#allocation2 + $0x38] sm:$0xff]
      %v1047 = vadd.f32 %v1039, %v1020
      %v1048 = vadd.f32 %v1040, %v1022
      %v1049 = vadd.f32 %v1041, %v1025
      %v1050 = vadd.f32 %v1042, %v1027
      %v1051 = vadd.f32 %v1043, %v1030
      %v1052 = vadd.f32 %v1044, %v1032
      %v1053 = vadd.f32 %v1045, %v1035
      %v1054 = vadd.f32 %v1046, %v1037
      %1055 = vst.msk [vmem:[#allocation2] sm:$0xff] %vm393, %v1047
      %1056 = vst.msk [vmem:[#allocation2 + $0x8] sm:$0xff] %vm393, %v1048
      %1057 = vst.msk [vmem:[#allocation2 + $0x10] sm:$0xff] %vm393, %v1049
      %1058 = vst.msk [vmem:[#allocation2 + $0x18] sm:$0xff] %vm393, %v1050
      %1059 = vst.msk [vmem:[#allocation2 + $0x20] sm:$0xff] %vm393, %v1051
      %1060 = vst.msk [vmem:[#allocation2 + $0x28] sm:$0xff] %vm393, %v1052
      %1061 = vst.msk [vmem:[#allocation2 + $0x30] sm:$0xff] %vm393, %v1053
      %1062 = vst.msk [vmem:[#allocation2 + $0x38] sm:$0xff] %vm393, %v1054
      %s1063 = scalar_lea.vmem %s2, 12
      %v1064 = vld [vmem:[%s1063] sm:$0x3]
      %v1066 = vunpack.c.l.b16 %v305
      %v1067 = vpack.c.b16 %v337, %v336
      %v1068 = vpack.c.b16 %v339, %v338
      %v1069 = vpack.c.b16 %v341, %v340
      %v1070 = vpack.c.b16 %v1066, %v342
      %v1072 = vsel %vm347, %v1067, 0
      %v1075 = vsel %vm347, %v1068, 0
      %v1078 = vsel %vm347, %v1069, 0
      %v1081 = vsel %vm347, %v1070, 0
      %v1084 = vsel %vm360, %v1064, 0
      %1086 = vmatpush.bf16.msra.mxu0 0
      %1087 = vmatpush.bf16.msra.mxu0 0
      %1088 = vmatpush.bf16.msra.mxu0 0
      %1089 = vmatpush.bf16.msra.mxu0 0
      %1090 = vmatpush.bf16.msra.mxu0 0
      %1091 = vmatpush.bf16.msra.mxu0 0
      %1092 = vmatpush.bf16.msra.mxu0 0
      %1093 = vmatpush.bf16.msra.mxu0 %v1084
      %1094 = vmatmul.bf16.gmra.mxu0 %v1072
      %v1095 = vpop.f32.mrf.mxu0
      %v1096 = vadd.f32 0.0, %v1095
      %v1097 = vpop.f32.mrf.mxu0
      %v1098 = vadd.f32 0.0, %v1097
      %1099 = vmatmul.bf16.gmra.mxu0 %v1075
      %v1100 = vpop.f32.mrf.mxu0
      %v1101 = vadd.f32 0.0, %v1100
      %v1102 = vpop.f32.mrf.mxu0
      %v1103 = vadd.f32 0.0, %v1102
      %1104 = vmatmul.bf16.gmra.mxu0 %v1078
      %v1105 = vpop.f32.mrf.mxu0
      %v1106 = vadd.f32 0.0, %v1105
      %v1107 = vpop.f32.mrf.mxu0
      %v1108 = vadd.f32 0.0, %v1107
      %1109 = vmatmul.bf16.gmra.mxu0 %v1081
      %v1110 = vpop.f32.mrf.mxu0
      %v1111 = vadd.f32 0.0, %v1110
      %v1112 = vpop.f32.mrf.mxu0
      %v1113 = vadd.f32 0.0, %v1112
      %1114 = vdwg.mxu0
      %v1115 = vld [vmem:[#allocation2] sm:$0xff]
      %v1116 = vld [vmem:[#allocation2 + $0x8] sm:$0xff]
      %v1117 = vld [vmem:[#allocation2 + $0x10] sm:$0xff]
      %v1118 = vld [vmem:[#allocation2 + $0x18] sm:$0xff]
      %v1119 = vld [vmem:[#allocation2 + $0x20] sm:$0xff]
      %v1120 = vld [vmem:[#allocation2 + $0x28] sm:$0xff]
      %v1121 = vld [vmem:[#allocation2 + $0x30] sm:$0xff]
      %v1122 = vld [vmem:[#allocation2 + $0x38] sm:$0xff]
      %v1123 = vadd.f32 %v1115, %v1096
      %v1124 = vadd.f32 %v1116, %v1098
      %v1125 = vadd.f32 %v1117, %v1101
      %v1126 = vadd.f32 %v1118, %v1103
      %v1127 = vadd.f32 %v1119, %v1106
      %v1128 = vadd.f32 %v1120, %v1108
      %v1129 = vadd.f32 %v1121, %v1111
      %v1130 = vadd.f32 %v1122, %v1113
      %1131 = vst.msk [vmem:[#allocation2] sm:$0xff] %vm393, %v1123
      %1132 = vst.msk [vmem:[#allocation2 + $0x8] sm:$0xff] %vm393, %v1124
      %1133 = vst.msk [vmem:[#allocation2 + $0x10] sm:$0xff] %vm393, %v1125
      %1134 = vst.msk [vmem:[#allocation2 + $0x18] sm:$0xff] %vm393, %v1126
      %1135 = vst.msk [vmem:[#allocation2 + $0x20] sm:$0xff] %vm393, %v1127
      %1136 = vst.msk [vmem:[#allocation2 + $0x28] sm:$0xff] %vm393, %v1128
      %1137 = vst.msk [vmem:[#allocation2 + $0x30] sm:$0xff] %vm393, %v1129
      %1138 = vst.msk [vmem:[#allocation2 + $0x38] sm:$0xff] %vm393, %v1130
      %s1139 = scalar_lea.vmem %s2, 14
      %v1140 = vld [vmem:[%s1139] sm:$0x3]
      %v1142 = vunpack.c.l.b16 %v325
      %v1143 = vpack.c.b16 %v414, %v413
      %v1144 = vpack.c.b16 %v416, %v415
      %v1145 = vpack.c.b16 %v418, %v417
      %v1146 = vpack.c.b16 %v1142, %v419
      %v1148 = vsel %vm347, %v1143, 0
      %v1151 = vsel %vm347, %v1144, 0
      %v1154 = vsel %vm347, %v1145, 0
      %v1157 = vsel %vm347, %v1146, 0
      %v1160 = vsel %vm360, %v1140, 0
      %1162 = vmatpush.bf16.msra.mxu0 0
      %1163 = vmatpush.bf16.msra.mxu0 0
      %1164 = vmatpush.bf16.msra.mxu0 0
      %1165 = vmatpush.bf16.msra.mxu0 0
      %1166 = vmatpush.bf16.msra.mxu0 0
      %1167 = vmatpush.bf16.msra.mxu0 0
      %1168 = vmatpush.bf16.msra.mxu0 0
      %1169 = vmatpush.bf16.msra.mxu0 %v1160
      %1170 = vmatmul.bf16.gmra.mxu0 %v1148
      %v1171 = vpop.f32.mrf.mxu0
      %v1172 = vadd.f32 0.0, %v1171
      %v1173 = vpop.f32.mrf.mxu0
      %v1174 = vadd.f32 0.0, %v1173
      %1175 = vmatmul.bf16.gmra.mxu0 %v1151
      %v1176 = vpop.f32.mrf.mxu0
      %v1177 = vadd.f32 0.0, %v1176
      %v1178 = vpop.f32.mrf.mxu0
      %v1179 = vadd.f32 0.0, %v1178
      %1180 = vmatmul.bf16.gmra.mxu0 %v1154
      %v1181 = vpop.f32.mrf.mxu0
      %v1182 = vadd.f32 0.0, %v1181
      %v1183 = vpop.f32.mrf.mxu0
      %v1184 = vadd.f32 0.0, %v1183
      %1185 = vmatmul.bf16.gmra.mxu0 %v1157
      %v1186 = vpop.f32.mrf.mxu0
      %v1187 = vadd.f32 0.0, %v1186
      %v1188 = vpop.f32.mrf.mxu0
      %v1189 = vadd.f32 0.0, %v1188
      %1190 = vdwg.mxu0
      %v1191 = vld [vmem:[#allocation2] sm:$0xff]
      %v1192 = vld [vmem:[#allocation2 + $0x8] sm:$0xff]
      %v1193 = vld [vmem:[#allocation2 + $0x10] sm:$0xff]
      %v1194 = vld [vmem:[#allocation2 + $0x18] sm:$0xff]
      %v1195 = vld [vmem:[#allocation2 + $0x20] sm:$0xff]
      %v1196 = vld [vmem:[#allocation2 + $0x28] sm:$0xff]
      %v1197 = vld [vmem:[#allocation2 + $0x30] sm:$0xff]
      %v1198 = vld [vmem:[#allocation2 + $0x38] sm:$0xff]
      %v1199 = vadd.f32 %v1191, %v1172
      %v1200 = vadd.f32 %v1192, %v1174
      %v1201 = vadd.f32 %v1193, %v1177
      %v1202 = vadd.f32 %v1194, %v1179
      %v1203 = vadd.f32 %v1195, %v1182
      %v1204 = vadd.f32 %v1196, %v1184
      %v1205 = vadd.f32 %v1197, %v1187
      %v1206 = vadd.f32 %v1198, %v1189
      %1207 = vst.msk [vmem:[#allocation2] sm:$0xff] %vm393, %v1199
      %1208 = vst.msk [vmem:[#allocation2 + $0x8] sm:$0xff] %vm393, %v1200
      %1209 = vst.msk [vmem:[#allocation2 + $0x10] sm:$0xff] %vm393, %v1201
      %1210 = vst.msk [vmem:[#allocation2 + $0x18] sm:$0xff] %vm393, %v1202
      %1211 = vst.msk [vmem:[#allocation2 + $0x20] sm:$0xff] %vm393, %v1203
      %1212 = vst.msk [vmem:[#allocation2 + $0x28] sm:$0xff] %vm393, %v1204
      %1213 = vst.msk [vmem:[#allocation2 + $0x30] sm:$0xff] %vm393, %v1205
      %1214 = vst.msk [vmem:[#allocation2 + $0x38] sm:$0xff] %vm393, %v1206
      %v1216 = vshrl.u32 %v305, 16
      %v1218 = vrot.slane %v1216, 4
      %v1219 = vshll.u32 %v305, 16
      %v1221 = vrot.slane %v1219, 5
      %v1222 = vor.u32 %v1218, %v1221
      %v1223 = vrot.slane %v1222, 4
      %v1225 = vshll.u32 %v306, 16
      %v1227 = vrot.slane %v1225, 5
      %v1228 = vsel %vm494, %v1223, %v1227
      %s1229 = scalar_lea.vmem %s2, 16
      %v1230 = vld [vmem:[%s1229] sm:$0x3]
      %v1231 = vunpack.c.l.b16 %v1228
      %v1232 = vpack.c.b16 %v611, %v610
      %v1233 = vpack.c.b16 %v613, %v612
      %v1234 = vpack.c.b16 %v615, %v614
      %v1235 = vpack.c.b16 %v1231, %v616
      %v1237 = vsel %vm347, %v1232, 0
      %v1240 = vsel %vm347, %v1233, 0
      %v1243 = vsel %vm347, %v1234, 0
      %v1246 = vsel %vm347, %v1235, 0
      %v1249 = vsel %vm360, %v1230, 0
      %1251 = vmatpush.bf16.msra.mxu0 0
      %1252 = vmatpush.bf16.msra.mxu0 0
      %1253 = vmatpush.bf16.msra.mxu0 0
      %1254 = vmatpush.bf16.msra.mxu0 0
      %1255 = vmatpush.bf16.msra.mxu0 0
      %1256 = vmatpush.bf16.msra.mxu0 0
      %1257 = vmatpush.bf16.msra.mxu0 0
      %1258 = vmatpush.bf16.msra.mxu0 %v1249
      %1259 = vmatmul.bf16.gmra.mxu0 %v1237
      %v1260 = vpop.f32.mrf.mxu0
      %v1261 = vadd.f32 0.0, %v1260
      %v1262 = vpop.f32.mrf.mxu0
      %v1263 = vadd.f32 0.0, %v1262
      %1264 = vmatmul.bf16.gmra.mxu0 %v1240
      %v1265 = vpop.f32.mrf.mxu0
      %v1266 = vadd.f32 0.0, %v1265
      %v1267 = vpop.f32.mrf.mxu0
      %v1268 = vadd.f32 0.0, %v1267
      %1269 = vmatmul.bf16.gmra.mxu0 %v1243
      %v1270 = vpop.f32.mrf.mxu0
      %v1271 = vadd.f32 0.0, %v1270
      %v1272 = vpop.f32.mrf.mxu0
      %v1273 = vadd.f32 0.0, %v1272
      %1274 = vmatmul.bf16.gmra.mxu0 %v1246
      %v1275 = vpop.f32.mrf.mxu0
      %v1276 = vadd.f32 0.0, %v1275
      %v1277 = vpop.f32.mrf.mxu0
      %v1278 = vadd.f32 0.0, %v1277
      %1279 = vdwg.mxu0
      %v1280 = vld [vmem:[#allocation2] sm:$0xff]
      %v1281 = vld [vmem:[#allocation2 + $0x8] sm:$0xff]
      %v1282 = vld [vmem:[#allocation2 + $0x10] sm:$0xff]
      %v1283 = vld [vmem:[#allocation2 + $0x18] sm:$0xff]
      %v1284 = vld [vmem:[#allocation2 + $0x20] sm:$0xff]
      %v1285 = vld [vmem:[#allocation2 + $0x28] sm:$0xff]
      %v1286 = vld [vmem:[#allocation2 + $0x30] sm:$0xff]
      %v1287 = vld [vmem:[#allocation2 + $0x38] sm:$0xff]
      %v1288 = vadd.f32 %v1280, %v1261
      %v1289 = vadd.f32 %v1281, %v1263
      %v1290 = vadd.f32 %v1282, %v1266
      %v1291 = vadd.f32 %v1283, %v1268
      %v1292 = vadd.f32 %v1284, %v1271
      %v1293 = vadd.f32 %v1285, %v1273
      %v1294 = vadd.f32 %v1286, %v1276
      %v1295 = vadd.f32 %v1287, %v1278
      %1296 = vst.msk [vmem:[#allocation2] sm:$0xff] %vm393, %v1288
      %1297 = vst.msk [vmem:[#allocation2 + $0x8] sm:$0xff] %vm393, %v1289
      %1298 = vst.msk [vmem:[#allocation2 + $0x10] sm:$0xff] %vm393, %v1290
      %1299 = vst.msk [vmem:[#allocation2 + $0x18] sm:$0xff] %vm393, %v1291
      %1300 = vst.msk [vmem:[#allocation2 + $0x20] sm:$0xff] %vm393, %v1292
      %1301 = vst.msk [vmem:[#allocation2 + $0x28] sm:$0xff] %vm393, %v1293
      %1302 = vst.msk [vmem:[#allocation2 + $0x30] sm:$0xff] %vm393, %v1294
      %1303 = vst.msk [vmem:[#allocation2 + $0x38] sm:$0xff] %vm393, %v1295
      %v1304 = vld [vmem:[#allocation2] sm:$0xff]
      %v1305 = vld [vmem:[#allocation2 + $0x8] sm:$0xff]
      %v1306 = vld [vmem:[#allocation2 + $0x10] sm:$0xff]
      %v1307 = vld [vmem:[#allocation2 + $0x18] sm:$0xff]
      %v1308 = vld [vmem:[#allocation2 + $0x20] sm:$0xff]
      %v1309 = vld [vmem:[#allocation2 + $0x28] sm:$0xff]
      %v1310 = vld [vmem:[#allocation2 + $0x30] sm:$0xff]
      %v1311 = vld [vmem:[#allocation2 + $0x38] sm:$0xff]
      %v1312 = vld [vmem:[%s3] sm:$0x1]
      %v1314 = vperm.slane %v1312, 0
      %v1316 = vmul.f32 %v1304, %v1314
      %v1317 = vmul.f32 %v1305, %v1314
      %v1318 = vmul.f32 %v1306, %v1314
      %v1319 = vmul.f32 %v1307, %v1314
      %v1320 = vmul.f32 %v1308, %v1314
      %v1321 = vmul.f32 %v1309, %v1314
      %v1322 = vmul.f32 %v1310, %v1314
      %v1323 = vmul.f32 %v1311, %v1314
      %v1324 = vld [vmem:[%s4] sm:$0x1]
      %v1326 = vperm.slane %v1324, 0
      %v1328 = vadd.f32 %v1316, %v1326
      %v1329 = vadd.f32 %v1317, %v1326
      %v1330 = vadd.f32 %v1318, %v1326
      %v1331 = vadd.f32 %v1319, %v1326
      %v1332 = vadd.f32 %v1320, %v1326
      %v1333 = vadd.f32 %v1321, %v1326
      %v1334 = vadd.f32 %v1322, %v1326
      %v1335 = vadd.f32 %v1323, %v1326
      %v1336 = vmul.f32 %v1328, 0.5
      %v1337 = vmul.f32 %v1329, 0.5
      %v1338 = vmul.f32 %v1330, 0.5
      %v1339 = vmul.f32 %v1331, 0.5
      %v1340 = vmul.f32 %v1332, 0.5
      %v1341 = vmul.f32 %v1333, 0.5
      %v1342 = vmul.f32 %v1334, 0.5
      %v1343 = vmul.f32 %v1335, 0.5
      %v1344 = vmul.f32 %v1328, %v1328
      %v1345 = vmul.f32 %v1329, %v1329
      %v1346 = vmul.f32 %v1330, %v1330
      %v1347 = vmul.f32 %v1331, %v1331
      %v1348 = vmul.f32 %v1332, %v1332
      %v1349 = vmul.f32 %v1333, %v1333
      %v1350 = vmul.f32 %v1334, %v1334
      %v1351 = vmul.f32 %v1335, %v1335
      %v1352 = vmul.f32 %v1344, %v1328
      %v1353 = vmul.f32 %v1345, %v1329
      %v1354 = vmul.f32 %v1346, %v1330
      %v1355 = vmul.f32 %v1347, %v1331
      %v1356 = vmul.f32 %v1348, %v1332
      %v1357 = vmul.f32 %v1349, %v1333
      %v1358 = vmul.f32 %v1350, %v1334
      %v1359 = vmul.f32 %v1351, %v1335
      %v1360 = vmul.f32 %v1352, 0.044715
      %v1361 = vmul.f32 %v1353, 0.044715
      %v1362 = vmul.f32 %v1354, 0.044715
      %v1363 = vmul.f32 %v1355, 0.044715
      %v1364 = vmul.f32 %v1356, 0.044715
      %v1365 = vmul.f32 %v1357, 0.044715
      %v1366 = vmul.f32 %v1358, 0.044715
      %v1367 = vmul.f32 %v1359, 0.044715
      %v1368 = vadd.f32 %v1328, %v1360
      %v1369 = vadd.f32 %v1329, %v1361
      %v1370 = vadd.f32 %v1330, %v1362
      %v1371 = vadd.f32 %v1331, %v1363
      %v1372 = vadd.f32 %v1332, %v1364
      %v1373 = vadd.f32 %v1333, %v1365
      %v1374 = vadd.f32 %v1334, %v1366
      %v1375 = vadd.f32 %v1335, %v1367
      %v1376 = vmul.f32 %v1368, 0.7978846
      %v1377 = vmul.f32 %v1369, 0.7978846
      %v1378 = vmul.f32 %v1370, 0.7978846
      %v1379 = vmul.f32 %v1371, 0.7978846
      %v1380 = vmul.f32 %v1372, 0.7978846
      %v1381 = vmul.f32 %v1373, 0.7978846
      %v1382 = vmul.f32 %v1374, 0.7978846
      %v1383 = vmul.f32 %v1375, 0.7978846
      %v1384 = vtanh.pop %v1376
      %v1385 = vtanh.pop %v1377
      %v1386 = vtanh.pop %v1378
      %v1387 = vtanh.pop %v1379
      %v1388 = vtanh.pop %v1380
      %v1389 = vtanh.pop %v1381
      %v1390 = vtanh.pop %v1382
      %v1391 = vtanh.pop %v1383
      %v1392 = vadd.f32 %v1384, 1.0
      %v1393 = vadd.f32 %v1385, 1.0
      %v1394 = vadd.f32 %v1386, 1.0
      %v1395 = vadd.f32 %v1387, 1.0
      %v1396 = vadd.f32 %v1388, 1.0
      %v1397 = vadd.f32 %v1389, 1.0
      %v1398 = vadd.f32 %v1390, 1.0
      %v1399 = vadd.f32 %v1391, 1.0
      %v1400 = vmul.f32 %v1336, %v1392
      %v1401 = vmul.f32 %v1337, %v1393
      %v1402 = vmul.f32 %v1338, %v1394
      %v1403 = vmul.f32 %v1339, %v1395
      %v1404 = vmul.f32 %v1340, %v1396
      %v1405 = vmul.f32 %v1341, %v1397
      %v1406 = vmul.f32 %v1342, %v1398
      %v1407 = vmul.f32 %v1343, %v1399
      %v1408 = vpack.c.bf16 %v1400, %v1400
      %v1409 = vpack.c.bf16 %v1401, %v1401
      %v1410 = vpack.c.bf16 %v1402, %v1402
      %v1411 = vpack.c.bf16 %v1403, %v1403
      %v1412 = vpack.c.bf16 %v1404, %v1404
      %v1413 = vpack.c.bf16 %v1405, %v1405
      %v1414 = vpack.c.bf16 %v1406, %v1406
      %v1415 = vpack.c.bf16 %v1407, %v1407
      %vm1416 = vcmask 125952
      %1417 = vst.msk [vmem:[%s266] sm:$0xf] %vm1416, %v1408
      %1418 = vst.msk [vmem:[%s266 + $0x4] sm:$0xf] %vm1416, %v1409
      %1419 = vst.msk [vmem:[%s266 + $0x8] sm:$0xf] %vm1416, %v1410
      %1420 = vst.msk [vmem:[%s266 + $0xc] sm:$0xf] %vm1416, %v1411
      %1421 = vst.msk [vmem:[%s266 + $0x10] sm:$0xf] %vm1416, %v1412
      %1422 = vst.msk [vmem:[%s266 + $0x14] sm:$0xf] %vm1416, %v1413
      %1423 = vst.msk [vmem:[%s266 + $0x18] sm:$0xf] %vm1416, %v1414
      %1424 = vst.msk [vmem:[%s266 + $0x1c] sm:$0xf] %vm1416, %v1415
      %s1425 = smul.u32 8, %s21
      %p1426 = scmp.lt.s32.totalorder %s20, 1
      %s1427 = scalar_select %p1426, %s20, 1
      %p1428 = scmp.lt.s32.totalorder %s1425, 7
      %s1429 = scalar_select %p1428, %s1425, 7
      %s1430 = smul.addr %s1427, 8
      %s1431 = sadd.s32 %s1429, %s1430
      %s1432 = smul.addr %s1431, 4
      %s1433 = scalar_lea.vmem %s5, %s1432
      // Predicated region
      $region41: #{conv_patch_embed_forward.2} parent=39 // pred_check
        %p1434 = pneg %p163
      $region42: #{conv_patch_embed_forward.2} parent=39 // pred_check_branch
        %1436 = sbr.rel (%p1434) target = $region44
      $region43: #{conv_patch_embed_forward.2} parent=39 // pred_region
        %s1437 = smul.u32 8, %s21
      $region44: #{conv_patch_embed_forward.2} parent=39 // pred_fallthru
        _
    $region40: #{conv_patch_embed_forward.2} parent=5 // pred_fallthru
      _
    %p1438 = scmp.le.s32.totalorder 2, %s11
    // Predicated region
    $region45: #{conv_patch_embed_forward.2} parent=5 // pred_check
      %p1439 = pneg %p1438
    $region46: #{conv_patch_embed_forward.2} parent=5 // pred_check_branch
      %1441 = sbr.rel (%p1439) target = $region48
    $region47: #{conv_patch_embed_forward.2} parent=5 // pred_region
      %s1442 = ssub.s32 %s11, 2
      // Predicated region
      $region49: #{conv_patch_embed_forward.2} parent=47 // pred_check
        %p1443 = pneg %p169
      $region50: #{conv_patch_embed_forward.2} parent=47 // pred_check_branch
        %1445 = sbr.rel (%p1443) target = $region52
      $region51: #{conv_patch_embed_forward.2} parent=47 // pred_region
        %s1446 = smul.u32 8, %s23
        %p1447 = scmp.lt.s32.totalorder %s22, 1
        %s1448 = scalar_select %p1447, %s22, 1
        %p1449 = scmp.lt.s32.totalorder %s1446, 7
        %s1450 = scalar_select %p1449, %s1446, 7
        %s1451 = smul.addr %s1448, 8
        %s1452 = sadd.s32 %s1450, %s1451
        %s1453 = smul.addr %s1452, 4
        %s1454 = scalar_lea.vmem %s5, %s1453
      $region52: #{conv_patch_embed_forward.2} parent=47 // pred_fallthru
        _
    $region48: #{conv_patch_embed_forward.2} parent=5 // pred_fallthru
      _
  $region6: #{conv_patch_embed_forward.2} parent=0 // loop_footer
    %s15 = sadd.s32 1, %s11
  $region7: #{conv_patch_embed_forward.2} parent=0 // loop_footer_branch
    %10 = sbr.rel target = $region3
  $region8: #{conv_patch_embed_forward.2} parent=0 // loop_exit
    _

</llo_original>
